<compile_context>
chip_gen: v7x
topology: tpu7x:2x2x1
jax: 0.10.0
libtpu: 0.0.40
codegen_flags: <defaults>
</compile_context>

<pallas_src>
import functools
import math

import jax
import jax.numpy as jnp
from jax.experimental import pallas as pl
from jax.experimental.pallas import tpu as pltpu

LN_EPS = 1e-5


def _layernorm(x, w, b, eps=LN_EPS):
    mu = jnp.mean(x, axis=-1, keepdims=True)
    var = jnp.mean(jnp.square(x - mu), axis=-1, keepdims=True)
    return (x - mu) * jax.lax.rsqrt(var + eps) * w + b


def _gtrxl_kernel(*refs, nhead, has_memory):
    if has_memory:
        (x_ref, mem_ref,
         aln_w_ref, aln_b_ref,
         wq_ref, bq_ref, wkv_ref, bkv_ref, wo_ref, bo_ref,
         fln_w_ref, fln_b_ref, w1_ref, b1_ref, w2_ref, b2_ref,
         gate_ref, out_ref) = refs
    else:
        (x_ref,
         aln_w_ref, aln_b_ref,
         wq_ref, bq_ref, wkv_ref, bkv_ref, wo_ref, bo_ref,
         fln_w_ref, fln_b_ref, w1_ref, b1_ref, w2_ref, b2_ref,
         gate_ref, out_ref) = refs
        mem_ref = None

    x = x_ref[...].astype(jnp.float32)            # (Bt, S, D)
    Bt, S, D = x.shape
    hd = D // nhead
    scale = 1.0 / math.sqrt(hd)

    if mem_ref is not None:
        mem = mem_ref[...].astype(jnp.float32)    # (Bt, M, D)
        xc = jnp.concatenate([mem, x], axis=1)    # (Bt, Sk, D), concat in VMEM
    else:
        xc = x
    Sk = xc.shape[1]

    # --- attention block ---
    # single LN over [memory ; src]; LN(src) == last S rows (LN is row-wise)
    xcn = _layernorm(xc, aln_w_ref[...], aln_b_ref[...])        # (Bt, Sk, D)
    xcn_flat = xcn.reshape(Bt * Sk, D)
    if mem_ref is not None:
        xn_flat = xcn[:, Sk - S:, :].reshape(Bt * S, D)
    else:
        xn_flat = xcn_flat

    # projections: bf16 MXU inputs, f32 accumulation; K and V fused (N = 2D)
    q = jnp.dot(xn_flat.astype(jnp.bfloat16), wq_ref[...],
                preferred_element_type=jnp.float32) + bq_ref[...]
    kv = jnp.dot(xcn_flat.astype(jnp.bfloat16), wkv_ref[...],
                 preferred_element_type=jnp.float32) + bkv_ref[...]

    # attention core: all heads batched into single einsum contractions
    attn_rows = []
    for b in range(Bt):                                   # Bt is small & static
        qb = q[b * S:(b + 1) * S, :]                      # (S, D)
        kvb = kv[b * Sk:(b + 1) * Sk, :]                  # (Sk, 2D)
        qh = jnp.stack([qb[:, h * hd:(h + 1) * hd] for h in range(nhead)],
                       axis=0).astype(jnp.bfloat16)       # (H, S, hd)
        kh = jnp.stack([kvb[:, h * hd:(h + 1) * hd] for h in range(nhead)],
                       axis=0).astype(jnp.bfloat16)       # (H, Sk, hd)
        vh = jnp.stack([kvb[:, D + h * hd:D + (h + 1) * hd] for h in range(nhead)],
                       axis=0).astype(jnp.bfloat16)       # (H, Sk, hd)
        s = jnp.einsum('hqd,hkd->hqk', qh, kh,
                       preferred_element_type=jnp.float32) * scale
        s = s - jnp.max(s, axis=-1, keepdims=True)
        p = jnp.exp(s)
        p = p * pl.reciprocal(jnp.sum(p, axis=-1, keepdims=True), approx=True)
        o = jnp.einsum('hqk,hkd->hqd', p.astype(jnp.bfloat16), vh,
                       preferred_element_type=jnp.float32)        # (H, S, hd)
        attn_rows.append(jnp.concatenate([o[h] for h in range(nhead)], axis=-1))
    attn = attn_rows[0] if Bt == 1 else jnp.concatenate(attn_rows, axis=0)

    attn = jnp.dot(attn.astype(jnp.bfloat16), wo_ref[...],
                   preferred_element_type=jnp.float32) + bo_ref[...]

    g_attn = gate_ref[0]                   # sigmoid already applied in wrapper
    x_flat = x.reshape(Bt * S, D)
    y = x_flat + g_attn * attn             # gated residual

    # --- feed-forward block ---
    yn = _layernorm(y, fln_w_ref[...], fln_b_ref[...])
    h1 = jnp.maximum(
        jnp.dot(yn.astype(jnp.bfloat16), w1_ref[...],
                preferred_element_type=jnp.float32) + b1_ref[...],
        0.0)
    ff = jnp.dot(h1.astype(jnp.bfloat16), w2_ref[...],
                 preferred_element_type=jnp.float32) + b2_ref[...]
    g_ff = gate_ref[1]
    out = y + g_ff * ff
    out_ref[...] = out.reshape(Bt, S, D).astype(out_ref.dtype)


def _pick_block_b(B, S, target_rows=512):
    """Largest divisor of B such that block rows <= target and grid stays >= 2."""
    best = 1
    for cand in range(1, B + 1):
        if B % cand != 0:
            continue
        if B >= 2 and B // cand < 2:
            continue                 # keep >=2 grid steps for dual-TC chips (v7x)
        if cand * S <= target_rows:
            best = cand
    return best


def gtrxl_layer(src, params, memory=None, *, nhead, block_b=None):
    """Pallas forward of GTrXLTransformerEncoderLayer (dropout = identity)."""
    B, S, D = src.shape
    M = 0 if memory is None else memory.shape[1]
    Sk = S + M
    dff = params["w1"].shape[1]

    if block_b is None:
        block_b = _pick_block_b(B, S)
    assert B % block_b == 0
    grid = (B // block_b,)

    # hoist the gate sigmoids out of the kernel; scalars live in SMEM
    gates = jax.nn.sigmoid(
        jnp.stack([params["attn_gate"], params["ff_gate"]])).astype(jnp.float32)

    # bf16 weights (halves VMEM footprint + uses the bf16 MXU path); K/V fused
    wq = params["wq"].astype(jnp.bfloat16)
    wkv = jnp.concatenate([params["wk"], params["wv"]], axis=1).astype(jnp.bfloat16)
    bkv = jnp.concatenate([params["bk"], params["bv"]], axis=1).astype(jnp.float32)
    wo = params["wo"].astype(jnp.bfloat16)
    w1 = params["w1"].astype(jnp.bfloat16)
    w2 = params["w2"].astype(jnp.bfloat16)

    def const2d(shape):
        return pl.BlockSpec(shape, lambda b: (0, 0))

    in_specs = [pl.BlockSpec((block_b, S, D), lambda b: (b, 0, 0))]
    inputs = [src]
    if memory is not None:
        in_specs.append(pl.BlockSpec((block_b, M, D), lambda b: (b, 0, 0)))
        inputs.append(memory)
    in_specs += [
        const2d((1, D)), const2d((1, D)),            # attn LN w, b
        const2d((D, D)), const2d((1, D)),            # Wq^T, bq
        const2d((D, 2 * D)), const2d((1, 2 * D)),    # [Wk^T | Wv^T], [bk | bv]
        const2d((D, D)), const2d((1, D)),            # Wo^T, bo
        const2d((1, D)), const2d((1, D)),            # ff LN w, b
        const2d((D, dff)), const2d((1, dff)),        # W1^T, b1
        const2d((dff, D)), const2d((1, D)),          # W2^T, b2
        pl.BlockSpec(memory_space=pltpu.MemorySpace.SMEM),   # sigmoid(gates)
    ]
    inputs += [
        params["attn_ln_w"], params["attn_ln_b"],
        wq, params["bq"], wkv, bkv, wo, params["bo"],
        params["ff_ln_w"], params["ff_ln_b"],
        w1, params["b1"], w2, params["b2"],
        gates,
    ]

    # explicit VMEM budget (bf16 weights + f32 activation blocks, with pipeline
    # double-buffering headroom), clamped to what every generation physically has
    # NOTE: real configs should keep D a multiple of 128 for lane-dense stores.
    weight_bytes = 2 * (D * D + 2 * D * D + D * D + 2 * D * dff) \
        + 4 * (8 * D + 2 * dff)
    act_bytes = 4 * block_b * (2 * S + Sk) * D
    vmem_limit = max(16 << 20, min(4 * (weight_bytes + act_bytes) + (4 << 20),
                                   64 << 20))

    flops = int(2 * B * (S * D * D + Sk * D * 2 * D + S * D * D + 2 * S * D * dff)
                + 4 * B * S * Sk * D)
    bytes_accessed = int(4 * B * (2 * S + Sk) * D + weight_bytes)
    cost = pl.CostEstimate(flops=flops, transcendentals=int(B * nhead * S * Sk),
                           bytes_accessed=bytes_accessed)

    out = pl.pallas_call(
        functools.partial(_gtrxl_kernel, nhead=nhead,
                          has_memory=memory is not None),
        out_shape=jax.ShapeDtypeStruct((B, S, D), src.dtype),
        grid=grid,
        in_specs=in_specs,
        out_specs=pl.BlockSpec((block_b, S, D), lambda b: (b, 0, 0)),
        compiler_params=pltpu.CompilerParams(
            dimension_semantics=("parallel",),
            vmem_limit_bytes=int(vmem_limit)),
        cost_estimate=cost,
    )(*inputs)
    return out


def gtrxl_reference(src, params, memory=None, *, nhead):
    """Pure-JAX f32 reference replicating the PyTorch forward (eval mode)."""
    if memory is not None:
        src_cat = jnp.concatenate([memory, src], axis=1)
    else:
        src_cat = src
    D = src.shape[-1]
    hd = D // nhead

    def ln(x, w, b):
        mu = jnp.mean(x, axis=-1, keepdims=True)
        var = jnp.mean(jnp.square(x - mu), axis=-1, keepdims=True)
        return (x - mu) / jnp.sqrt(var + LN_EPS) * w[0] + b[0]

    xn = ln(src, params["attn_ln_w"], params["attn_ln_b"])
    xcn = ln(src_cat, params["attn_ln_w"], params["attn_ln_b"])
    q = xn @ params["wq"] + params["bq"][0]
    k = xcn @ params["wk"] + params["bk"][0]
    v = xcn @ params["wv"] + params["bv"][0]

    B, S, _ = q.shape
    Sk = k.shape[1]
    qh = q.reshape(B, S, nhead, hd).transpose(0, 2, 1, 3)
    kh = k.reshape(B, Sk, nhead, hd).transpose(0, 2, 1, 3)
    vh = v.reshape(B, Sk, nhead, hd).transpose(0, 2, 1, 3)
    s = jnp.einsum("bhqd,bhkd->bhqk", qh, kh) / math.sqrt(hd)
    p = jax.nn.softmax(s, axis=-1)
    attn = jnp.einsum("bhqk,bhkd->bhqd", p, vh).transpose(0, 2, 1, 3).reshape(B, S, D)
    attn = attn @ params["wo"] + params["bo"][0]
    y = src + jax.nn.sigmoid(params["attn_gate"]) * attn

    yn = ln(y, params["ff_ln_w"], params["ff_ln_b"])
    ff = jnp.maximum(yn @ params["w1"] + params["b1"][0], 0.0) @ params["w2"] \
        + params["b2"][0]
    return y + jax.nn.sigmoid(params["ff_gate"]) * ff


def make_params(key, d_model, nhead, dim_feedforward):
    ks = jax.random.split(key, 12)
    D, F = d_model, dim_feedforward
    sD = 1.0 / math.sqrt(D)
    sF = 1.0 / math.sqrt(F)
    in_proj_w = jax.random.normal(ks[0], (3 * D, D), jnp.float32) * sD
    in_proj_b = jax.random.normal(ks[1], (3 * D,), jnp.float32) * 0.1
    out_proj_w = jax.random.normal(ks[2], (D, D), jnp.float32) * sD
    out_proj_b = jax.random.normal(ks[3], (D,), jnp.float32) * 0.1
    w1 = jax.random.normal(ks[4], (F, D), jnp.float32) * sD        # linear1.weight
    b1 = jax.random.normal(ks[5], (F,), jnp.float32) * 0.1
    w2 = jax.random.normal(ks[6], (D, F), jnp.float32) * sF        # linear2.weight
    b2 = jax.random.normal(ks[7], (D,), jnp.float32) * 0.1
    return {
        # weights pre-transposed so the kernel does x @ W
        "wq": in_proj_w[:D].T, "wk": in_proj_w[D:2 * D].T, "wv": in_proj_w[2 * D:].T,
        "bq": in_proj_b[:D].reshape(1, D),
        "bk": in_proj_b[D:2 * D].reshape(1, D),
        "bv": in_proj_b[2 * D:].reshape(1, D),
        "wo": out_proj_w.T, "bo": out_proj_b.reshape(1, D),
        "attn_ln_w": (1.0 + 0.1 * jax.random.normal(ks[8], (D,), jnp.float32)).reshape(1, D),
        "attn_ln_b": (0.1 * jax.random.normal(ks[9], (D,), jnp.float32)).reshape(1, D),
        "ff_ln_w": (1.0 + 0.1 * jax.random.normal(ks[10], (D,), jnp.float32)).reshape(1, D),
        "ff_ln_b": (0.1 * jax.random.normal(ks[11], (D,), jnp.float32)).reshape(1, D),
        "w1": w1.T, "b1": b1.reshape(1, F),
        "w2": w2.T, "b2": b2.reshape(1, D),
        "attn_gate": jnp.float32(0.3),
        "ff_gate": jnp.float32(-0.2),
    }


if __name__ == "__main__":
    B, S, D, NHEAD, DFF, M = 2, 8, 32, 4, 64, 8
    key = jax.random.PRNGKey(0)
    k_x, k_m, k_p = jax.random.split(key, 3)
    src = jax.random.normal(k_x, (B, S, D), jnp.float32)
    mem = jax.random.normal(k_m, (B, M, D), jnp.float32)
    params = make_params(k_p, D, NHEAD, DFF)

    # tolerance covers bf16 matmul inputs vs. the pure-f32 reference
    ATOL = RTOL = 7.5e-2

    # no-memory path
    out = jax.block_until_ready(gtrxl_layer(src, params, memory=None, nhead=NHEAD))
    ref = jax.block_until_ready(gtrxl_reference(src, params, memory=None, nhead=NHEAD))
    assert out.shape == (B, S, D) and out.dtype == jnp.float32
    assert jnp.allclose(out, ref, atol=ATOL, rtol=RTOL), \
        float(jnp.max(jnp.abs(out - ref)))

    # memory path (memory passed separately, concatenated inside the kernel)
    out_m = jax.block_until_ready(gtrxl_layer(src, params, memory=mem, nhead=NHEAD))
    ref_m = jax.block_until_ready(gtrxl_reference(src, params, memory=mem, nhead=NHEAD))
    assert out_m.shape == (B, S, D)
    assert jnp.allclose(out_m, ref_m, atol=ATOL, rtol=RTOL), \
        float(jnp.max(jnp.abs(out_m - ref_m)))

    print("KERNEL_OK")
</pallas_src>

<mosaic_0001>
module attributes {stable_mosaic.version = 11 : i64} {
  func.func @_gtrxl_kernel(%arg0: i32, %arg1: memref<1x8x32xf32, #tpu.memory_space<vmem>>, %arg2: memref<1x32xf32, #tpu.memory_space<vmem>>, %arg3: memref<1x32xf32, #tpu.memory_space<vmem>>, %arg4: memref<32x32xbf16, #tpu.memory_space<vmem>>, %arg5: memref<1x32xf32, #tpu.memory_space<vmem>>, %arg6: memref<32x64xbf16, #tpu.memory_space<vmem>>, %arg7: memref<1x64xf32, #tpu.memory_space<vmem>>, %arg8: memref<32x32xbf16, #tpu.memory_space<vmem>>, %arg9: memref<1x32xf32, #tpu.memory_space<vmem>>, %arg10: memref<1x32xf32, #tpu.memory_space<vmem>>, %arg11: memref<1x32xf32, #tpu.memory_space<vmem>>, %arg12: memref<32x64xbf16, #tpu.memory_space<vmem>>, %arg13: memref<1x64xf32, #tpu.memory_space<vmem>>, %arg14: memref<64x32xbf16, #tpu.memory_space<vmem>>, %arg15: memref<1x32xf32, #tpu.memory_space<vmem>>, %arg16: memref<2xf32, #tpu.memory_space<smem>>, %arg17: memref<1x8x32xf32, #tpu.memory_space<vmem>>) attributes {dimension_semantics = [#tpu.dimension_semantics<parallel>], iteration_bounds = array<i64: 2>, scalar_prefetch = 0 : i64, scratch_operands = 0 : i64, tpu.core_type = #tpu.core_type<tc>, window_params = [{transform_indices = @transform_0, window_bounds = array<i64: 1, 8, 32>}, {pipeline_mode = #tpu.pipeline_mode<synchronous>, transform_indices = @transform_1, window_bounds = array<i64: 1, 32>}, {pipeline_mode = #tpu.pipeline_mode<synchronous>, transform_indices = @transform_2, window_bounds = array<i64: 1, 32>}, {pipeline_mode = #tpu.pipeline_mode<synchronous>, transform_indices = @transform_3, window_bounds = array<i64: 32, 32>}, {pipeline_mode = #tpu.pipeline_mode<synchronous>, transform_indices = @transform_4, window_bounds = array<i64: 1, 32>}, {pipeline_mode = #tpu.pipeline_mode<synchronous>, transform_indices = @transform_5, window_bounds = array<i64: 32, 64>}, {pipeline_mode = #tpu.pipeline_mode<synchronous>, transform_indices = @transform_6, window_bounds = array<i64: 1, 64>}, {pipeline_mode = #tpu.pipeline_mode<synchronous>, transform_indices = @transform_7, window_bounds = array<i64: 32, 32>}, {pipeline_mode = #tpu.pipeline_mode<synchronous>, transform_indices = @transform_8, window_bounds = array<i64: 1, 32>}, {pipeline_mode = #tpu.pipeline_mode<synchronous>, transform_indices = @transform_9, window_bounds = array<i64: 1, 32>}, {pipeline_mode = #tpu.pipeline_mode<synchronous>, transform_indices = @transform_10, window_bounds = array<i64: 1, 32>}, {pipeline_mode = #tpu.pipeline_mode<synchronous>, transform_indices = @transform_11, window_bounds = array<i64: 32, 64>}, {pipeline_mode = #tpu.pipeline_mode<synchronous>, transform_indices = @transform_12, window_bounds = array<i64: 1, 64>}, {pipeline_mode = #tpu.pipeline_mode<synchronous>, transform_indices = @transform_13, window_bounds = array<i64: 64, 32>}, {pipeline_mode = #tpu.pipeline_mode<synchronous>, transform_indices = @transform_14, window_bounds = array<i64: 1, 32>}, {transform_indices = @transform_15, window_bounds = array<i64: 2>}, {transform_indices = @transform_16, window_bounds = array<i64: 1, 8, 32>}]} {
    %c0 = arith.constant 0 : index
    %c0_0 = arith.constant 0 : index
    %c0_1 = arith.constant 0 : index
    %0 = vector.load %arg1[%c0, %c0_0, %c0_1] : memref<1x8x32xf32, #tpu.memory_space<vmem>>, vector<1x8x32xf32>
    %c0_2 = arith.constant 0 : index
    %c0_3 = arith.constant 0 : index
    %1 = vector.load %arg2[%c0_2, %c0_3] : memref<1x32xf32, #tpu.memory_space<vmem>>, vector<1x32xf32>
    %c0_4 = arith.constant 0 : index
    %c0_5 = arith.constant 0 : index
    %2 = vector.load %arg3[%c0_4, %c0_5] : memref<1x32xf32, #tpu.memory_space<vmem>>, vector<1x32xf32>
    %cst = arith.constant dense<0.000000e+00> : vector<1x8xf32>
    %3 = vector.multi_reduction <add>, %0, %cst [2] : vector<1x8x32xf32> to vector<1x8xf32>
    %4 = vector.shape_cast %3 : vector<1x8xf32> to vector<1x8x1xf32>
    %cst_6 = arith.constant 3.200000e+01 : f32
    %5 = vector.broadcast %cst_6 : f32 to vector<1x8x1xf32>
    %6 = arith.divf %4, %5 : vector<1x8x1xf32>
    %7 = vector.broadcast %6 : vector<1x8x1xf32> to vector<1x8x32xf32>
    %8 = arith.subf %0, %7 : vector<1x8x32xf32>
    %9 = arith.mulf %8, %8 : vector<1x8x32xf32>
    %cst_7 = arith.constant dense<0.000000e+00> : vector<1x8xf32>
    %10 = vector.multi_reduction <add>, %9, %cst_7 [2] : vector<1x8x32xf32> to vector<1x8xf32>
    %11 = vector.shape_cast %10 : vector<1x8xf32> to vector<1x8x1xf32>
    %cst_8 = arith.constant 3.200000e+01 : f32
    %12 = vector.broadcast %cst_8 : f32 to vector<1x8x1xf32>
    %13 = arith.divf %11, %12 : vector<1x8x1xf32>
    %14 = vector.broadcast %6 : vector<1x8x1xf32> to vector<1x8x32xf32>
    %15 = arith.subf %0, %14 : vector<1x8x32xf32>
    %cst_9 = arith.constant 9.99999974E-6 : f32
    %16 = vector.broadcast %cst_9 : f32 to vector<1x8x1xf32>
    %17 = arith.addf %13, %16 : vector<1x8x1xf32>
    %18 = math.rsqrt %17 : vector<1x8x1xf32>
    %19 = vector.broadcast %18 : vector<1x8x1xf32> to vector<1x8x32xf32>
    %20 = arith.mulf %15, %19 : vector<1x8x32xf32>
    %21 = vector.shape_cast %1 : vector<1x32xf32> to vector<1x1x32xf32>
    %22 = vector.broadcast %21 : vector<1x1x32xf32> to vector<1x8x32xf32>
    %23 = arith.mulf %20, %22 : vector<1x8x32xf32>
    %24 = vector.shape_cast %2 : vector<1x32xf32> to vector<1x1x32xf32>
    %25 = vector.broadcast %24 : vector<1x1x32xf32> to vector<1x8x32xf32>
    %26 = arith.addf %23, %25 : vector<1x8x32xf32>
    %27 = vector.shape_cast %26 : vector<1x8x32xf32> to vector<8x32xf32>
    %28 = arith.truncf %27 : vector<8x32xf32> to vector<8x32xbf16>
    %c0_10 = arith.constant 0 : index
    %c0_11 = arith.constant 0 : index
    %29 = vector.load %arg4[%c0_10, %c0_11] : memref<32x32xbf16, #tpu.memory_space<vmem>>, vector<32x32xbf16>
    %cst_12 = arith.constant dense<0.000000e+00> : vector<8x32xf32>
    %30 = tpu.matmul %28, %29, %cst_12 {dimension_numbers = #tpu.dot_dimension_numbers<[1], [0], [0], [1], [0, 0, 1, 1], [], []>} : vector<8x32xbf16>, vector<32x32xbf16>, vector<8x32xf32> -> vector<8x32xf32>
    %c0_13 = arith.constant 0 : index
    %c0_14 = arith.constant 0 : index
    %31 = vector.load %arg5[%c0_13, %c0_14] : memref<1x32xf32, #tpu.memory_space<vmem>>, vector<1x32xf32>
    %32 = vector.broadcast %31 : vector<1x32xf32> to vector<8x32xf32>
    %33 = arith.addf %30, %32 : vector<8x32xf32>
    %34 = arith.truncf %27 : vector<8x32xf32> to vector<8x32xbf16>
    %c0_15 = arith.constant 0 : index
    %c0_16 = arith.constant 0 : index
    %35 = vector.load %arg6[%c0_15, %c0_16] : memref<32x64xbf16, #tpu.memory_space<vmem>>, vector<32x64xbf16>
    %cst_17 = arith.constant dense<0.000000e+00> : vector<8x64xf32>
    %36 = tpu.matmul %34, %35, %cst_17 {dimension_numbers = #tpu.dot_dimension_numbers<[1], [0], [0], [1], [0, 0, 1, 1], [], []>} : vector<8x32xbf16>, vector<32x64xbf16>, vector<8x64xf32> -> vector<8x64xf32>
    %c0_18 = arith.constant 0 : index
    %c0_19 = arith.constant 0 : index
    %37 = vector.load %arg7[%c0_18, %c0_19] : memref<1x64xf32, #tpu.memory_space<vmem>>, vector<1x64xf32>
    %38 = vector.broadcast %37 : vector<1x64xf32> to vector<8x64xf32>
    %39 = arith.addf %36, %38 : vector<8x64xf32>
    %40 = vector.extract_strided_slice %33 {offsets = [0, 0], sizes = [8, 8], strides = [1, 1]} : vector<8x32xf32> to vector<8x8xf32>
    %41 = vector.extract_strided_slice %33 {offsets = [0, 8], sizes = [8, 8], strides = [1, 1]} : vector<8x32xf32> to vector<8x8xf32>
    %42 = vector.extract_strided_slice %33 {offsets = [0, 16], sizes = [8, 8], strides = [1, 1]} : vector<8x32xf32> to vector<8x8xf32>
    %43 = vector.extract_strided_slice %33 {offsets = [0, 24], sizes = [8, 8], strides = [1, 1]} : vector<8x32xf32> to vector<8x8xf32>
    %44 = vector.shape_cast %40 : vector<8x8xf32> to vector<1x8x8xf32>
    %45 = vector.shape_cast %41 : vector<8x8xf32> to vector<1x8x8xf32>
    %46 = vector.shape_cast %42 : vector<8x8xf32> to vector<1x8x8xf32>
    %47 = vector.shape_cast %43 : vector<8x8xf32> to vector<1x8x8xf32>
    %48 = tpu.concatenate %44, %45, %46, %47 in 0 : vector<1x8x8xf32>, vector<1x8x8xf32>, vector<1x8x8xf32>, vector<1x8x8xf32> -> vector<4x8x8xf32>
    %49 = arith.truncf %48 : vector<4x8x8xf32> to vector<4x8x8xbf16>
    %50 = vector.extract_strided_slice %39 {offsets = [0, 0], sizes = [8, 8], strides = [1, 1]} : vector<8x64xf32> to vector<8x8xf32>
    %51 = vector.extract_strided_slice %39 {offsets = [0, 8], sizes = [8, 8], strides = [1, 1]} : vector<8x64xf32> to vector<8x8xf32>
    %52 = vector.extract_strided_slice %39 {offsets = [0, 16], sizes = [8, 8], strides = [1, 1]} : vector<8x64xf32> to vector<8x8xf32>
    %53 = vector.extract_strided_slice %39 {offsets = [0, 24], sizes = [8, 8], strides = [1, 1]} : vector<8x64xf32> to vector<8x8xf32>
    %54 = vector.shape_cast %50 : vector<8x8xf32> to vector<1x8x8xf32>
    %55 = vector.shape_cast %51 : vector<8x8xf32> to vector<1x8x8xf32>
    %56 = vector.shape_cast %52 : vector<8x8xf32> to vector<1x8x8xf32>
    %57 = vector.shape_cast %53 : vector<8x8xf32> to vector<1x8x8xf32>
    %58 = tpu.concatenate %54, %55, %56, %57 in 0 : vector<1x8x8xf32>, vector<1x8x8xf32>, vector<1x8x8xf32>, vector<1x8x8xf32> -> vector<4x8x8xf32>
    %59 = arith.truncf %58 : vector<4x8x8xf32> to vector<4x8x8xbf16>
    %60 = vector.extract_strided_slice %39 {offsets = [0, 32], sizes = [8, 8], strides = [1, 1]} : vector<8x64xf32> to vector<8x8xf32>
    %61 = vector.extract_strided_slice %39 {offsets = [0, 40], sizes = [8, 8], strides = [1, 1]} : vector<8x64xf32> to vector<8x8xf32>
    %62 = vector.extract_strided_slice %39 {offsets = [0, 48], sizes = [8, 8], strides = [1, 1]} : vector<8x64xf32> to vector<8x8xf32>
    %63 = vector.extract_strided_slice %39 {offsets = [0, 56], sizes = [8, 8], strides = [1, 1]} : vector<8x64xf32> to vector<8x8xf32>
    %64 = vector.shape_cast %60 : vector<8x8xf32> to vector<1x8x8xf32>
    %65 = vector.shape_cast %61 : vector<8x8xf32> to vector<1x8x8xf32>
    %66 = vector.shape_cast %62 : vector<8x8xf32> to vector<1x8x8xf32>
    %67 = vector.shape_cast %63 : vector<8x8xf32> to vector<1x8x8xf32>
    %68 = tpu.concatenate %64, %65, %66, %67 in 0 : vector<1x8x8xf32>, vector<1x8x8xf32>, vector<1x8x8xf32>, vector<1x8x8xf32> -> vector<4x8x8xf32>
    %69 = arith.truncf %68 : vector<4x8x8xf32> to vector<4x8x8xbf16>
    "tpu.trace_start"() <{level = 10 : i32, message = "hqd,hkd->hqk"}> : () -> ()
    %cst_20 = arith.constant dense<0.000000e+00> : vector<4x8x8xf32>
    %70 = tpu.matmul %49, %59, %cst_20 {dimension_numbers = #tpu.dot_dimension_numbers<[2], [2], [1], [1], [0, 0, 0, 1, 1, 1], [0], [0]>} : vector<4x8x8xbf16>, vector<4x8x8xbf16>, vector<4x8x8xf32> -> vector<4x8x8xf32>
    "tpu.trace_stop"() : () -> ()
    %cst_21 = arith.constant 0.353553385 : f32
    %71 = vector.broadcast %cst_21 : f32 to vector<4x8x8xf32>
    %72 = arith.mulf %70, %71 : vector<4x8x8xf32>
    %cst_22 = arith.constant dense<0xFF800000> : vector<4x8xf32>
    %73 = vector.multi_reduction <maximumf>, %72, %cst_22 [2] : vector<4x8x8xf32> to vector<4x8xf32>
    %74 = vector.shape_cast %73 : vector<4x8xf32> to vector<4x8x1xf32>
    %75 = vector.broadcast %74 : vector<4x8x1xf32> to vector<4x8x8xf32>
    %76 = arith.subf %72, %75 : vector<4x8x8xf32>
    %77 = math.exp %76 : vector<4x8x8xf32>
    %cst_23 = arith.constant dense<0.000000e+00> : vector<4x8xf32>
    %78 = vector.multi_reduction <add>, %77, %cst_23 [2] : vector<4x8x8xf32> to vector<4x8xf32>
    %79 = vector.shape_cast %78 : vector<4x8xf32> to vector<4x8x1xf32>
    %80 = tpu.reciprocal %79 {approx = true} : vector<4x8x1xf32> -> vector<4x8x1xf32>
    %81 = vector.broadcast %80 : vector<4x8x1xf32> to vector<4x8x8xf32>
    %82 = arith.mulf %77, %81 : vector<4x8x8xf32>
    %83 = arith.truncf %82 : vector<4x8x8xf32> to vector<4x8x8xbf16>
    "tpu.trace_start"() <{level = 10 : i32, message = "hqk,hkd->hqd"}> : () -> ()
    %cst_24 = arith.constant dense<0.000000e+00> : vector<4x8x8xf32>
    %84 = tpu.matmul %83, %69, %cst_24 {dimension_numbers = #tpu.dot_dimension_numbers<[2], [1], [1], [2], [0, 0, 0, 1, 1, 2], [0], [0]>} : vector<4x8x8xbf16>, vector<4x8x8xbf16>, vector<4x8x8xf32> -> vector<4x8x8xf32>
    "tpu.trace_stop"() : () -> ()
    %85 = vector.extract_strided_slice %84 {offsets = [0, 0, 0], sizes = [1, 8, 8], strides = [1, 1, 1]} : vector<4x8x8xf32> to vector<1x8x8xf32>
    %86 = vector.shape_cast %85 : vector<1x8x8xf32> to vector<8x8xf32>
    %87 = vector.extract_strided_slice %84 {offsets = [1, 0, 0], sizes = [1, 8, 8], strides = [1, 1, 1]} : vector<4x8x8xf32> to vector<1x8x8xf32>
    %88 = vector.shape_cast %87 : vector<1x8x8xf32> to vector<8x8xf32>
    %89 = vector.extract_strided_slice %84 {offsets = [2, 0, 0], sizes = [1, 8, 8], strides = [1, 1, 1]} : vector<4x8x8xf32> to vector<1x8x8xf32>
    %90 = vector.shape_cast %89 : vector<1x8x8xf32> to vector<8x8xf32>
    %91 = vector.extract_strided_slice %84 {offsets = [3, 0, 0], sizes = [1, 8, 8], strides = [1, 1, 1]} : vector<4x8x8xf32> to vector<1x8x8xf32>
    %92 = vector.shape_cast %91 : vector<1x8x8xf32> to vector<8x8xf32>
    %93 = tpu.concatenate %86, %88, %90, %92 in 1 : vector<8x8xf32>, vector<8x8xf32>, vector<8x8xf32>, vector<8x8xf32> -> vector<8x32xf32>
    %94 = arith.truncf %93 : vector<8x32xf32> to vector<8x32xbf16>
    %c0_25 = arith.constant 0 : index
    %c0_26 = arith.constant 0 : index
    %95 = vector.load %arg8[%c0_25, %c0_26] : memref<32x32xbf16, #tpu.memory_space<vmem>>, vector<32x32xbf16>
    %cst_27 = arith.constant dense<0.000000e+00> : vector<8x32xf32>
    %96 = tpu.matmul %94, %95, %cst_27 {dimension_numbers = #tpu.dot_dimension_numbers<[1], [0], [0], [1], [0, 0, 1, 1], [], []>} : vector<8x32xbf16>, vector<32x32xbf16>, vector<8x32xf32> -> vector<8x32xf32>
    %c0_28 = arith.constant 0 : index
    %c0_29 = arith.constant 0 : index
    %97 = vector.load %arg9[%c0_28, %c0_29] : memref<1x32xf32, #tpu.memory_space<vmem>>, vector<1x32xf32>
    %98 = vector.broadcast %97 : vector<1x32xf32> to vector<8x32xf32>
    %99 = arith.addf %96, %98 : vector<8x32xf32>
    %c0_30 = arith.constant 0 : index
    %100 = memref.load %arg16[%c0_30] : memref<2xf32, #tpu.memory_space<smem>>
    %101 = vector.shape_cast %0 : vector<1x8x32xf32> to vector<8x32xf32>
    %102 = vector.broadcast %100 : f32 to vector<8x32xf32>
    %103 = arith.mulf %102, %99 : vector<8x32xf32>
    %104 = arith.addf %101, %103 : vector<8x32xf32>
    %c0_31 = arith.constant 0 : index
    %c0_32 = arith.constant 0 : index
    %105 = vector.load %arg10[%c0_31, %c0_32] : memref<1x32xf32, #tpu.memory_space<vmem>>, vector<1x32xf32>
    %c0_33 = arith.constant 0 : index
    %c0_34 = arith.constant 0 : index
    %106 = vector.load %arg11[%c0_33, %c0_34] : memref<1x32xf32, #tpu.memory_space<vmem>>, vector<1x32xf32>
    %cst_35 = arith.constant dense<0.000000e+00> : vector<8xf32>
    %107 = vector.multi_reduction <add>, %104, %cst_35 [1] : vector<8x32xf32> to vector<8xf32>
    %108 = vector.shape_cast %107 : vector<8xf32> to vector<8x1xf32>
    %cst_36 = arith.constant 3.200000e+01 : f32
    %109 = vector.broadcast %cst_36 : f32 to vector<8x1xf32>
    %110 = arith.divf %108, %109 : vector<8x1xf32>
    %111 = vector.broadcast %110 : vector<8x1xf32> to vector<8x32xf32>
    %112 = arith.subf %104, %111 : vector<8x32xf32>
    %113 = arith.mulf %112, %112 : vector<8x32xf32>
    %cst_37 = arith.constant dense<0.000000e+00> : vector<8xf32>
    %114 = vector.multi_reduction <add>, %113, %cst_37 [1] : vector<8x32xf32> to vector<8xf32>
    %115 = vector.shape_cast %114 : vector<8xf32> to vector<8x1xf32>
    %cst_38 = arith.constant 3.200000e+01 : f32
    %116 = vector.broadcast %cst_38 : f32 to vector<8x1xf32>
    %117 = arith.divf %115, %116 : vector<8x1xf32>
    %118 = vector.broadcast %110 : vector<8x1xf32> to vector<8x32xf32>
    %119 = arith.subf %104, %118 : vector<8x32xf32>
    %cst_39 = arith.constant 9.99999974E-6 : f32
    %120 = vector.broadcast %cst_39 : f32 to vector<8x1xf32>
    %121 = arith.addf %117, %120 : vector<8x1xf32>
    %122 = math.rsqrt %121 : vector<8x1xf32>
    %123 = vector.broadcast %122 : vector<8x1xf32> to vector<8x32xf32>
    %124 = arith.mulf %119, %123 : vector<8x32xf32>
    %125 = vector.broadcast %105 : vector<1x32xf32> to vector<8x32xf32>
    %126 = arith.mulf %124, %125 : vector<8x32xf32>
    %127 = vector.broadcast %106 : vector<1x32xf32> to vector<8x32xf32>
    %128 = arith.addf %126, %127 : vector<8x32xf32>
    %129 = arith.truncf %128 : vector<8x32xf32> to vector<8x32xbf16>
    %c0_40 = arith.constant 0 : index
    %c0_41 = arith.constant 0 : index
    %130 = vector.load %arg12[%c0_40, %c0_41] : memref<32x64xbf16, #tpu.memory_space<vmem>>, vector<32x64xbf16>
    %cst_42 = arith.constant dense<0.000000e+00> : vector<8x64xf32>
    %131 = tpu.matmul %129, %130, %cst_42 {dimension_numbers = #tpu.dot_dimension_numbers<[1], [0], [0], [1], [0, 0, 1, 1], [], []>} : vector<8x32xbf16>, vector<32x64xbf16>, vector<8x64xf32> -> vector<8x64xf32>
    %c0_43 = arith.constant 0 : index
    %c0_44 = arith.constant 0 : index
    %132 = vector.load %arg13[%c0_43, %c0_44] : memref<1x64xf32, #tpu.memory_space<vmem>>, vector<1x64xf32>
    %133 = vector.broadcast %132 : vector<1x64xf32> to vector<8x64xf32>
    %134 = arith.addf %131, %133 : vector<8x64xf32>
    %cst_45 = arith.constant 0.000000e+00 : f32
    %135 = vector.broadcast %cst_45 : f32 to vector<8x64xf32>
    %136 = arith.maximumf %134, %135 : vector<8x64xf32>
    %137 = arith.truncf %136 : vector<8x64xf32> to vector<8x64xbf16>
    %c0_46 = arith.constant 0 : index
    %c0_47 = arith.constant 0 : index
    %138 = vector.load %arg14[%c0_46, %c0_47] : memref<64x32xbf16, #tpu.memory_space<vmem>>, vector<64x32xbf16>
    %cst_48 = arith.constant dense<0.000000e+00> : vector<8x32xf32>
    %139 = tpu.matmul %137, %138, %cst_48 {dimension_numbers = #tpu.dot_dimension_numbers<[1], [0], [0], [1], [0, 0, 1, 1], [], []>} : vector<8x64xbf16>, vector<64x32xbf16>, vector<8x32xf32> -> vector<8x32xf32>
    %c0_49 = arith.constant 0 : index
    %c0_50 = arith.constant 0 : index
    %140 = vector.load %arg15[%c0_49, %c0_50] : memref<1x32xf32, #tpu.memory_space<vmem>>, vector<1x32xf32>
    %141 = vector.broadcast %140 : vector<1x32xf32> to vector<8x32xf32>
    %142 = arith.addf %139, %141 : vector<8x32xf32>
    %c1 = arith.constant 1 : index
    %143 = memref.load %arg16[%c1] : memref<2xf32, #tpu.memory_space<smem>>
    %144 = vector.broadcast %143 : f32 to vector<8x32xf32>
    %145 = arith.mulf %144, %142 : vector<8x32xf32>
    %146 = arith.addf %104, %145 : vector<8x32xf32>
    %147 = vector.shape_cast %146 : vector<8x32xf32> to vector<1x8x32xf32>
    %c0_51 = arith.constant 0 : index
    %c0_52 = arith.constant 0 : index
    %c0_53 = arith.constant 0 : index
    %148 = vector.load %arg17[%c0_51, %c0_52, %c0_53] : memref<1x8x32xf32, #tpu.memory_space<vmem>>, vector<1x8x32xf32>
    tpu.vector_store %arg17[%c0_51, %c0_52, %c0_53], %147 {strides = array<i32>} : memref<1x8x32xf32, #tpu.memory_space<vmem>>, vector<1x8x32xf32>,
    return
  }
  func.func @transform_0(%arg0: i32) -> (i32, i32, i32) {
    %c0_i32 = arith.constant 0 : i32
    %c0_i32_0 = arith.constant 0 : i32
    %c0_i32_1 = arith.constant 0 : i32
    return %arg0, %c0_i32, %c0_i32_0 : i32, i32, i32
  }
  func.func @transform_1(%arg0: i32) -> (i32, i32) {
    %c0_i32 = arith.constant 0 : i32
    %c0_i32_0 = arith.constant 0 : i32
    %c0_i32_1 = arith.constant 0 : i32
    return %c0_i32, %c0_i32_0 : i32, i32
  }
  func.func @transform_2(%arg0: i32) -> (i32, i32) {
    %c0_i32 = arith.constant 0 : i32
    %c0_i32_0 = arith.constant 0 : i32
    %c0_i32_1 = arith.constant 0 : i32
    return %c0_i32, %c0_i32_0 : i32, i32
  }
  func.func @transform_3(%arg0: i32) -> (i32, i32) {
    %c0_i32 = arith.constant 0 : i32
    %c0_i32_0 = arith.constant 0 : i32
    %c0_i32_1 = arith.constant 0 : i32
    return %c0_i32, %c0_i32_0 : i32, i32
  }
  func.func @transform_4(%arg0: i32) -> (i32, i32) {
    %c0_i32 = arith.constant 0 : i32
    %c0_i32_0 = arith.constant 0 : i32
    %c0_i32_1 = arith.constant 0 : i32
    return %c0_i32, %c0_i32_0 : i32, i32
  }
  func.func @transform_5(%arg0: i32) -> (i32, i32) {
    %c0_i32 = arith.constant 0 : i32
    %c0_i32_0 = arith.constant 0 : i32
    %c0_i32_1 = arith.constant 0 : i32
    return %c0_i32, %c0_i32_0 : i32, i32
  }
  func.func @transform_6(%arg0: i32) -> (i32, i32) {
    %c0_i32 = arith.constant 0 : i32
    %c0_i32_0 = arith.constant 0 : i32
    %c0_i32_1 = arith.constant 0 : i32
    return %c0_i32, %c0_i32_0 : i32, i32
  }
  func.func @transform_7(%arg0: i32) -> (i32, i32) {
    %c0_i32 = arith.constant 0 : i32
    %c0_i32_0 = arith.constant 0 : i32
    %c0_i32_1 = arith.constant 0 : i32
    return %c0_i32, %c0_i32_0 : i32, i32
  }
  func.func @transform_8(%arg0: i32) -> (i32, i32) {
    %c0_i32 = arith.constant 0 : i32
    %c0_i32_0 = arith.constant 0 : i32
    %c0_i32_1 = arith.constant 0 : i32
    return %c0_i32, %c0_i32_0 : i32, i32
  }
  func.func @transform_9(%arg0: i32) -> (i32, i32) {
    %c0_i32 = arith.constant 0 : i32
    %c0_i32_0 = arith.constant 0 : i32
    %c0_i32_1 = arith.constant 0 : i32
    return %c0_i32, %c0_i32_0 : i32, i32
  }
  func.func @transform_10(%arg0: i32) -> (i32, i32) {
    %c0_i32 = arith.constant 0 : i32
    %c0_i32_0 = arith.constant 0 : i32
    %c0_i32_1 = arith.constant 0 : i32
    return %c0_i32, %c0_i32_0 : i32, i32
  }
  func.func @transform_11(%arg0: i32) -> (i32, i32) {
    %c0_i32 = arith.constant 0 : i32
    %c0_i32_0 = arith.constant 0 : i32
    %c0_i32_1 = arith.constant 0 : i32
    return %c0_i32, %c0_i32_0 : i32, i32
  }
  func.func @transform_12(%arg0: i32) -> (i32, i32) {
    %c0_i32 = arith.constant 0 : i32
    %c0_i32_0 = arith.constant 0 : i32
    %c0_i32_1 = arith.constant 0 : i32
    return %c0_i32, %c0_i32_0 : i32, i32
  }
  func.func @transform_13(%arg0: i32) -> (i32, i32) {
    %c0_i32 = arith.constant 0 : i32
    %c0_i32_0 = arith.constant 0 : i32
    %c0_i32_1 = arith.constant 0 : i32
    return %c0_i32, %c0_i32_0 : i32, i32
  }
  func.func @transform_14(%arg0: i32) -> (i32, i32) {
    %c0_i32 = arith.constant 0 : i32
    %c0_i32_0 = arith.constant 0 : i32
    %c0_i32_1 = arith.constant 0 : i32
    return %c0_i32, %c0_i32_0 : i32, i32
  }
  func.func @transform_15(%arg0: i32) -> i32 {
    %c0_i32 = arith.constant 0 : i32
    %c0_i32_0 = arith.constant 0 : i32
    return %c0_i32 : i32
  }
  func.func @transform_16(%arg0: i32) -> (i32, i32, i32) {
    %c0_i32 = arith.constant 0 : i32
    %c0_i32_0 = arith.constant 0 : i32
    %c0_i32_1 = arith.constant 0 : i32
    return %arg0, %c0_i32, %c0_i32_0 : i32, i32, i32
  }
}

</mosaic_0001>

<llo_original>
// kernel: tpu_custom_call.1
$region0: #{tpu_custom_call.1}
  #allocation0 [shape = 'u32[]', space=smem, size = 0x4, offset = 0x4, fixed_abs, tag = 'smem constant byte address 0x4 - core index']
  #allocation1 [shape = 'u32[144,128]{1,0:T(1,128)}', space=vmem, size = 0x12000, scoped, tag = 'internal scratch']
  %s0 = inlined_call_operand.vmem [shape: f32[2,8,32], index: 0, kind: input, shape index: {}]
  %s1 = inlined_call_operand.vmem [shape: f32[1,32], index: 1, kind: input, shape index: {}]
  %s2 = inlined_call_operand.vmem [shape: f32[1,32], index: 2, kind: input, shape index: {}]
  %s3 = inlined_call_operand.vmem [shape: bf16[32,32], index: 3, kind: input, shape index: {}]
  %s4 = inlined_call_operand.hbm [shape: f32[1,32], index: 4, kind: input, shape index: {}]
  %s5 = inlined_call_operand.vmem [shape: bf16[32,64], index: 5, kind: input, shape index: {}]
  %s6 = inlined_call_operand.hbm [shape: f32[1,64], index: 6, kind: input, shape index: {}]
  %s7 = inlined_call_operand.hbm [shape: bf16[32,32], index: 7, kind: input, shape index: {}]
  %s8 = inlined_call_operand.hbm [shape: f32[1,32], index: 8, kind: input, shape index: {}]
  %s9 = inlined_call_operand.hbm [shape: f32[1,32], index: 9, kind: input, shape index: {}]
  %s10 = inlined_call_operand.vmem [shape: f32[1,32], index: 10, kind: input, shape index: {}]
  %s11 = inlined_call_operand.vmem [shape: bf16[32,64], index: 11, kind: input, shape index: {}]
  %s12 = inlined_call_operand.vmem [shape: f32[1,64], index: 12, kind: input, shape index: {}]
  %s13 = inlined_call_operand.vmem [shape: bf16[64,32], index: 13, kind: input, shape index: {}]
  %s14 = inlined_call_operand.vmem [shape: f32[1,32], index: 14, kind: input, shape index: {}]
  %s15 = inlined_call_operand.vmem [shape: f32[2], index: 15, kind: input, shape index: {}]
  %s16 = inlined_call_operand.hbm [shape: f32[2,8,32], index: 16, kind: output, shape index: {}]
  %s17 = sld [smem:[#allocation0]]
  $region121: #{tpu_custom_call.1} parent=0
    _
  %s19 = ssub.s32 1, %s17
  %s20 = scalar_select 0, %s19, %s17
  $region1: #{tpu_custom_call.1} parent=0
    #allocation2 [shape = 'u8[512]{0}', space=vmem, size = 0x400, scoped, tag = 'input window, operand 4, single buffered']
    #allocation3 [shape = 's32[2]{0}', space=sflag, size = 0x8, scoped, tag = 'scoped memory for tpu_custom_call.1']
    #allocation4 [shape = 's32[2]{0}', space=sflag, size = 0x8, scoped, tag = 'scoped memory for tpu_custom_call.1']
    #allocation5 [shape = 's32[2]{0}', space=sflag, size = 0x8, scoped, tag = 'scoped memory for tpu_custom_call.1']
    #allocation6 [shape = 'u8[512]{0}', space=vmem, size = 0x400, scoped, tag = 'input window, operand 6, single buffered']
    #allocation7 [shape = 's32[1]{0}', space=sflag, size = 0x4, scoped, tag = 'scoped memory for tpu_custom_call.1']
    #allocation8 [shape = 'u8[8192]{0}', space=vmem, size = 0x2000, scoped, tag = 'input window, operand 7, single buffered']
    #allocation9 [shape = 'u8[512]{0}', space=vmem, size = 0x400, scoped, tag = 'input window, operand 8, single buffered']
    #allocation10 [shape = 's32[1]{0}', space=sflag, size = 0x4, scoped, tag = 'scoped memory for tpu_custom_call.1']
    #allocation11 [shape = 'u8[512]{0}', space=vmem, size = 0x400, scoped, tag = 'input window, operand 9, single buffered']
    #allocation12 [shape = 'u8[512]{0}', space=smem, size = 0x200, scoped, tag = 'input window, operand 15, single buffered']
    #allocation13 [shape = 'u8[8192]{0}', space=vmem, size = 0x2000, scoped, tag = 'output window, operand 0']
    %21 = vsyncpa [#allocation3], 0
    %22 = vsyncpa [#allocation7], 0
    %23 = vsyncpa [#allocation10], 0
    %24 = vsyncpa [#allocation5], 0
    %25 = vsyncpa [#allocation4], 0
    %s26 = scalar_lea.sflag [#allocation4], 1
    %27 = vsyncpa %s26, 0
    loop: start=0, step=1, limit=4
    $region2: #{tpu_custom_call.1} parent=1 // loop_pre_header
      _
    $region3: #{tpu_custom_call.1} parent=1 // loop_header
      %s29 = sphi 0, %s33
      %p30 = scmp.ge.s32.totalorder %s29, 4
      %s39 = sphi 0, %s41
      %s42 = sphi 0, %s39
      %s43 = sphi 0, %s42
      %s59 = sphi 0, %s43
      %s63 = sphi 0, %s63
      %s65 = sphi 0, %s63
      %s66 = sphi 0, %s65
      %s80 = sphi 0, %s66
      %s84 = sphi 0, %s84
      %s86 = sphi 0, %s84
      %s87 = sphi 0, %s86
      %s101 = sphi 0, %s87
      %s105 = sphi 0, %s105
      %s107 = sphi 0, %s105
      %s108 = sphi 0, %s107
      %s122 = sphi 0, %s108
      %s126 = sphi 0, %s126
      %s128 = sphi 0, %s126
      %s129 = sphi 0, %s128
      %s143 = sphi 0, %s129
      %s147 = sphi 0, %s147
      %s149 = sphi 0, %s147
      %s150 = sphi 0, %s149
      %s164 = sphi 0, %s150
      %s168 = sphi 0, %s168
      %s170 = sphi 0, %s168
      %s171 = sphi 0, %s170
      %s185 = sphi 0, %s171
      %s189 = sphi 0, %s189
      %s191 = sphi 0, %s189
      %s192 = sphi 0, %s191
      %s206 = sphi 0, %s192
      %s210 = sphi 0, %s210
      %s212 = sphi 0, %s210
      %s213 = sphi 0, %s212
      %s227 = sphi 0, %s213
      %s231 = sphi 0, %s231
      %s233 = sphi 0, %s231
      %s234 = sphi 0, %s233
      %s248 = sphi 0, %s234
      %s252 = sphi 0, %s252
      %s254 = sphi 0, %s252
      %s255 = sphi 0, %s254
      %s269 = sphi 0, %s255
      %s273 = sphi 0, %s273
      %s275 = sphi 0, %s273
      %s276 = sphi 0, %s275
      %s290 = sphi 0, %s276
      %s294 = sphi 0, %s294
      %s296 = sphi 0, %s294
      %s297 = sphi 0, %s296
      %s311 = sphi 0, %s297
      %s315 = sphi 0, %s315
      %s317 = sphi 0, %s315
      %s318 = sphi 0, %s317
      %s332 = sphi 0, %s318
      %s336 = sphi 0, %s336
      %s338 = sphi 0, %s336
      %s339 = sphi 0, %s338
      %s353 = sphi 0, %s339
      %s357 = sphi 0, %s357
      %s359 = sphi 0, %s357
      %s360 = sphi 0, %s359
      %s374 = sphi 0, %s360
      %s380 = sphi 0, %s382
      %s383 = sphi 0, %s380
      %s384 = sphi 0, %s383
      %s400 = sphi 0, %s384
    $region4: #{tpu_custom_call.1} parent=1 // loop_header_branch
      %32 = sbr.rel (%p30) target = $region8
    $region5: #{tpu_custom_call.1} parent=1 // loop_body
      %s34 = ssub.s32 %s29, 1
      %s35 = ssub.s32 %s29, 2
      %s36 = sadd.s32 %s29, 1
      %s37 = ssub.s32 %s29, %s36
      %p38 = scmp.eq.s32.totalorder %s37, 0
      %s40 = sadd.s32 %s39, 1
      %s41 = scalar_select %p38, %s39, %s40
      %p44 = pneg %p38
      %p45 = scmp.eq.s32.totalorder %s29, 1
      %p46 = por %p44, %p45
      %p47 = scmp.ne.s32.totalorder %s39, %s42
      %p48 = scmp.eq.s32.totalorder %s29, 0
      %p49 = por %p47, %p48
      %p50 = scmp.ne.s32.totalorder %s39, %s42
      %p51 = scmp.eq.s32.totalorder %s34, 1
      %p52 = por %p50, %p51
      %p53 = scmp.ne.s32.totalorder %s42, %s43
      %p54 = scmp.eq.s32.totalorder %s34, 0
      %p55 = por %p53, %p54
      %p56 = scmp.ne.s32.totalorder %s42, %s43
      %p57 = scmp.eq.s32.totalorder %s35, 1
      %p58 = por %p56, %p57
      %p60 = scmp.ne.s32.totalorder %s43, %s59
      %p61 = scmp.eq.s32.totalorder %s35, 0
      %p62 = por %p60, %p61
      %s64 = sadd.s32 %s63, 1
      %p67 = scmp.eq.s32.totalorder %s29, 1
      %p68 = scmp.ne.s32.totalorder %s63, %s65
      %p69 = scmp.eq.s32.totalorder %s29, 0
      %p70 = por %p68, %p69
      %p71 = scmp.ne.s32.totalorder %s63, %s65
      %p72 = scmp.eq.s32.totalorder %s34, 1
      %p73 = por %p71, %p72
      %p74 = scmp.ne.s32.totalorder %s65, %s66
      %p75 = scmp.eq.s32.totalorder %s34, 0
      %p76 = por %p74, %p75
      %p77 = scmp.ne.s32.totalorder %s65, %s66
      %p78 = scmp.eq.s32.totalorder %s35, 1
      %p79 = por %p77, %p78
      %p81 = scmp.ne.s32.totalorder %s66, %s80
      %p82 = scmp.eq.s32.totalorder %s35, 0
      %p83 = por %p81, %p82
      %s85 = sadd.s32 %s84, 1
      %p88 = scmp.eq.s32.totalorder %s29, 1
      %p89 = scmp.ne.s32.totalorder %s84, %s86
      %p90 = scmp.eq.s32.totalorder %s29, 0
      %p91 = por %p89, %p90
      %p92 = scmp.ne.s32.totalorder %s84, %s86
      %p93 = scmp.eq.s32.totalorder %s34, 1
      %p94 = por %p92, %p93
      %p95 = scmp.ne.s32.totalorder %s86, %s87
      %p96 = scmp.eq.s32.totalorder %s34, 0
      %p97 = por %p95, %p96
      %p98 = scmp.ne.s32.totalorder %s86, %s87
      %p99 = scmp.eq.s32.totalorder %s35, 1
      %p100 = por %p98, %p99
      %p102 = scmp.ne.s32.totalorder %s87, %s101
      %p103 = scmp.eq.s32.totalorder %s35, 0
      %p104 = por %p102, %p103
      %s106 = sadd.s32 %s105, 1
      %p109 = scmp.eq.s32.totalorder %s29, 1
      %p110 = scmp.ne.s32.totalorder %s105, %s107
      %p111 = scmp.eq.s32.totalorder %s29, 0
      %p112 = por %p110, %p111
      %p113 = scmp.ne.s32.totalorder %s105, %s107
      %p114 = scmp.eq.s32.totalorder %s34, 1
      %p115 = por %p113, %p114
      %p116 = scmp.ne.s32.totalorder %s107, %s108
      %p117 = scmp.eq.s32.totalorder %s34, 0
      %p118 = por %p116, %p117
      %p119 = scmp.ne.s32.totalorder %s107, %s108
      %p120 = scmp.eq.s32.totalorder %s35, 1
      %p121 = por %p119, %p120
      %p123 = scmp.ne.s32.totalorder %s108, %s122
      %p124 = scmp.eq.s32.totalorder %s35, 0
      %p125 = por %p123, %p124
      %s127 = sadd.s32 %s126, 1
      %p130 = scmp.eq.s32.totalorder %s29, 1
      %p131 = scmp.ne.s32.totalorder %s126, %s128
      %p132 = scmp.eq.s32.totalorder %s29, 0
      %p133 = por %p131, %p132
      %p134 = scmp.ne.s32.totalorder %s126, %s128
      %p135 = scmp.eq.s32.totalorder %s34, 1
      %p136 = por %p134, %p135
      %p137 = scmp.ne.s32.totalorder %s128, %s129
      %p138 = scmp.eq.s32.totalorder %s34, 0
      %p139 = por %p137, %p138
      %p140 = scmp.ne.s32.totalorder %s128, %s129
      %p141 = scmp.eq.s32.totalorder %s35, 1
      %p142 = por %p140, %p141
      %p144 = scmp.ne.s32.totalorder %s129, %s143
      %p145 = scmp.eq.s32.totalorder %s35, 0
      %p146 = por %p144, %p145
      %s148 = sadd.s32 %s147, 1
      %p151 = scmp.eq.s32.totalorder %s29, 1
      %p152 = scmp.ne.s32.totalorder %s147, %s149
      %p153 = scmp.eq.s32.totalorder %s29, 0
      %p154 = por %p152, %p153
      %p155 = scmp.ne.s32.totalorder %s147, %s149
      %p156 = scmp.eq.s32.totalorder %s34, 1
      %p157 = por %p155, %p156
      %p158 = scmp.ne.s32.totalorder %s149, %s150
      %p159 = scmp.eq.s32.totalorder %s34, 0
      %p160 = por %p158, %p159
      %p161 = scmp.ne.s32.totalorder %s149, %s150
      %p162 = scmp.eq.s32.totalorder %s35, 1
      %p163 = por %p161, %p162
      %p165 = scmp.ne.s32.totalorder %s150, %s164
      %p166 = scmp.eq.s32.totalorder %s35, 0
      %p167 = por %p165, %p166
      %s169 = sadd.s32 %s168, 1
      %p172 = scmp.eq.s32.totalorder %s29, 1
      %p173 = scmp.ne.s32.totalorder %s168, %s170
      %p174 = scmp.eq.s32.totalorder %s29, 0
      %p175 = por %p173, %p174
      %p176 = scmp.ne.s32.totalorder %s168, %s170
      %p177 = scmp.eq.s32.totalorder %s34, 1
      %p178 = por %p176, %p177
      %p179 = scmp.ne.s32.totalorder %s170, %s171
      %p180 = scmp.eq.s32.totalorder %s34, 0
      %p181 = por %p179, %p180
      %p182 = scmp.ne.s32.totalorder %s170, %s171
      %p183 = scmp.eq.s32.totalorder %s35, 1
      %p184 = por %p182, %p183
      %p186 = scmp.ne.s32.totalorder %s171, %s185
      %p187 = scmp.eq.s32.totalorder %s35, 0
      %p188 = por %p186, %p187
      %s190 = sadd.s32 %s189, 1
      %p193 = scmp.eq.s32.totalorder %s29, 1
      %p194 = scmp.ne.s32.totalorder %s189, %s191
      %p195 = scmp.eq.s32.totalorder %s29, 0
      %p196 = por %p194, %p195
      %p197 = scmp.ne.s32.totalorder %s189, %s191
      %p198 = scmp.eq.s32.totalorder %s34, 1
      %p199 = por %p197, %p198
      %p200 = scmp.ne.s32.totalorder %s191, %s192
      %p201 = scmp.eq.s32.totalorder %s34, 0
      %p202 = por %p200, %p201
      %p203 = scmp.ne.s32.totalorder %s191, %s192
      %p204 = scmp.eq.s32.totalorder %s35, 1
      %p205 = por %p203, %p204
      %p207 = scmp.ne.s32.totalorder %s192, %s206
      %p208 = scmp.eq.s32.totalorder %s35, 0
      %p209 = por %p207, %p208
      %s211 = sadd.s32 %s210, 1
      %p214 = scmp.eq.s32.totalorder %s29, 1
      %p215 = scmp.ne.s32.totalorder %s210, %s212
      %p216 = scmp.eq.s32.totalorder %s29, 0
      %p217 = por %p215, %p216
      %p218 = scmp.ne.s32.totalorder %s210, %s212
      %p219 = scmp.eq.s32.totalorder %s34, 1
      %p220 = por %p218, %p219
      %p221 = scmp.ne.s32.totalorder %s212, %s213
      %p222 = scmp.eq.s32.totalorder %s34, 0
      %p223 = por %p221, %p222
      %p224 = scmp.ne.s32.totalorder %s212, %s213
      %p225 = scmp.eq.s32.totalorder %s35, 1
      %p226 = por %p224, %p225
      %p228 = scmp.ne.s32.totalorder %s213, %s227
      %p229 = scmp.eq.s32.totalorder %s35, 0
      %p230 = por %p228, %p229
      %s232 = sadd.s32 %s231, 1
      %p235 = scmp.eq.s32.totalorder %s29, 1
      %p236 = scmp.ne.s32.totalorder %s231, %s233
      %p237 = scmp.eq.s32.totalorder %s29, 0
      %p238 = por %p236, %p237
      %p239 = scmp.ne.s32.totalorder %s231, %s233
      %p240 = scmp.eq.s32.totalorder %s34, 1
      %p241 = por %p239, %p240
      %p242 = scmp.ne.s32.totalorder %s233, %s234
      %p243 = scmp.eq.s32.totalorder %s34, 0
      %p244 = por %p242, %p243
      %p245 = scmp.ne.s32.totalorder %s233, %s234
      %p246 = scmp.eq.s32.totalorder %s35, 1
      %p247 = por %p245, %p246
      %p249 = scmp.ne.s32.totalorder %s234, %s248
      %p250 = scmp.eq.s32.totalorder %s35, 0
      %p251 = por %p249, %p250
      %s253 = sadd.s32 %s252, 1
      %p256 = scmp.eq.s32.totalorder %s29, 1
      %p257 = scmp.ne.s32.totalorder %s252, %s254
      %p258 = scmp.eq.s32.totalorder %s29, 0
      %p259 = por %p257, %p258
      %p260 = scmp.ne.s32.totalorder %s252, %s254
      %p261 = scmp.eq.s32.totalorder %s34, 1
      %p262 = por %p260, %p261
      %p263 = scmp.ne.s32.totalorder %s254, %s255
      %p264 = scmp.eq.s32.totalorder %s34, 0
      %p265 = por %p263, %p264
      %p266 = scmp.ne.s32.totalorder %s254, %s255
      %p267 = scmp.eq.s32.totalorder %s35, 1
      %p268 = por %p266, %p267
      %p270 = scmp.ne.s32.totalorder %s255, %s269
      %p271 = scmp.eq.s32.totalorder %s35, 0
      %p272 = por %p270, %p271
      %s274 = sadd.s32 %s273, 1
      %p277 = scmp.eq.s32.totalorder %s29, 1
      %p278 = scmp.ne.s32.totalorder %s273, %s275
      %p279 = scmp.eq.s32.totalorder %s29, 0
      %p280 = por %p278, %p279
      %p281 = scmp.ne.s32.totalorder %s273, %s275
      %p282 = scmp.eq.s32.totalorder %s34, 1
      %p283 = por %p281, %p282
      %p284 = scmp.ne.s32.totalorder %s275, %s276
      %p285 = scmp.eq.s32.totalorder %s34, 0
      %p286 = por %p284, %p285
      %p287 = scmp.ne.s32.totalorder %s275, %s276
      %p288 = scmp.eq.s32.totalorder %s35, 1
      %p289 = por %p287, %p288
      %p291 = scmp.ne.s32.totalorder %s276, %s290
      %p292 = scmp.eq.s32.totalorder %s35, 0
      %p293 = por %p291, %p292
      %s295 = sadd.s32 %s294, 1
      %p298 = scmp.eq.s32.totalorder %s29, 1
      %p299 = scmp.ne.s32.totalorder %s294, %s296
      %p300 = scmp.eq.s32.totalorder %s29, 0
      %p301 = por %p299, %p300
      %p302 = scmp.ne.s32.totalorder %s294, %s296
      %p303 = scmp.eq.s32.totalorder %s34, 1
      %p304 = por %p302, %p303
      %p305 = scmp.ne.s32.totalorder %s296, %s297
      %p306 = scmp.eq.s32.totalorder %s34, 0
      %p307 = por %p305, %p306
      %p308 = scmp.ne.s32.totalorder %s296, %s297
      %p309 = scmp.eq.s32.totalorder %s35, 1
      %p310 = por %p308, %p309
      %p312 = scmp.ne.s32.totalorder %s297, %s311
      %p313 = scmp.eq.s32.totalorder %s35, 0
      %p314 = por %p312, %p313
      %s316 = sadd.s32 %s315, 1
      %p319 = scmp.eq.s32.totalorder %s29, 1
      %p320 = scmp.ne.s32.totalorder %s315, %s317
      %p321 = scmp.eq.s32.totalorder %s29, 0
      %p322 = por %p320, %p321
      %p323 = scmp.ne.s32.totalorder %s315, %s317
      %p324 = scmp.eq.s32.totalorder %s34, 1
      %p325 = por %p323, %p324
      %p326 = scmp.ne.s32.totalorder %s317, %s318
      %p327 = scmp.eq.s32.totalorder %s34, 0
      %p328 = por %p326, %p327
      %p329 = scmp.ne.s32.totalorder %s317, %s318
      %p330 = scmp.eq.s32.totalorder %s35, 1
      %p331 = por %p329, %p330
      %p333 = scmp.ne.s32.totalorder %s318, %s332
      %p334 = scmp.eq.s32.totalorder %s35, 0
      %p335 = por %p333, %p334
      %s337 = sadd.s32 %s336, 1
      %p340 = scmp.eq.s32.totalorder %s29, 1
      %p341 = scmp.ne.s32.totalorder %s336, %s338
      %p342 = scmp.eq.s32.totalorder %s29, 0
      %p343 = por %p341, %p342
      %p344 = scmp.ne.s32.totalorder %s336, %s338
      %p345 = scmp.eq.s32.totalorder %s34, 1
      %p346 = por %p344, %p345
      %p347 = scmp.ne.s32.totalorder %s338, %s339
      %p348 = scmp.eq.s32.totalorder %s34, 0
      %p349 = por %p347, %p348
      %p350 = scmp.ne.s32.totalorder %s338, %s339
      %p351 = scmp.eq.s32.totalorder %s35, 1
      %p352 = por %p350, %p351
      %p354 = scmp.ne.s32.totalorder %s339, %s353
      %p355 = scmp.eq.s32.totalorder %s35, 0
      %p356 = por %p354, %p355
      %s358 = sadd.s32 %s357, 1
      %p361 = scmp.eq.s32.totalorder %s29, 1
      %p362 = scmp.ne.s32.totalorder %s357, %s359
      %p363 = scmp.eq.s32.totalorder %s29, 0
      %p364 = por %p362, %p363
      %p365 = scmp.ne.s32.totalorder %s357, %s359
      %p366 = scmp.eq.s32.totalorder %s34, 1
      %p367 = por %p365, %p366
      %p368 = scmp.ne.s32.totalorder %s359, %s360
      %p369 = scmp.eq.s32.totalorder %s34, 0
      %p370 = por %p368, %p369
      %p371 = scmp.ne.s32.totalorder %s359, %s360
      %p372 = scmp.eq.s32.totalorder %s35, 1
      %p373 = por %p371, %p372
      %p375 = scmp.ne.s32.totalorder %s360, %s374
      %p376 = scmp.eq.s32.totalorder %s35, 0
      %p377 = por %p375, %p376
      %s378 = ssub.s32 %s29, %s36
      %p379 = scmp.eq.s32.totalorder %s378, 0
      %s381 = sadd.s32 %s380, 1
      %s382 = scalar_select %p379, %s380, %s381
      %p385 = pneg %p379
      %p386 = scmp.eq.s32.totalorder %s29, 1
      %p387 = por %p385, %p386
      %p388 = scmp.ne.s32.totalorder %s380, %s383
      %p389 = scmp.eq.s32.totalorder %s29, 0
      %p390 = por %p388, %p389
      %p391 = scmp.ne.s32.totalorder %s380, %s383
      %p392 = scmp.eq.s32.totalorder %s34, 1
      %p393 = por %p391, %p392
      %p394 = scmp.ne.s32.totalorder %s383, %s384
      %p395 = scmp.eq.s32.totalorder %s34, 0
      %p396 = por %p394, %p395
      %p397 = scmp.ne.s32.totalorder %s383, %s384
      %p398 = scmp.eq.s32.totalorder %s35, 1
      %p399 = por %p397, %p398
      %p401 = scmp.ne.s32.totalorder %s384, %s400
      %p402 = scmp.eq.s32.totalorder %s35, 0
      %p403 = por %p401, %p402
      %p404 = scmp.le.s32.totalorder 1, %s29
      %p405 = scmp.lt.s32.totalorder %s29, 3
      %p406 = pnand %p404, %p405
      %p407 = pneg %p406
      // Predicated region
      $region9: #{tpu_custom_call.1} parent=5 // pred_check
        _
      $region10: #{tpu_custom_call.1} parent=5 // pred_check_branch
        %409 = sbr.rel (%p406) target = $region12
      $region11: #{tpu_custom_call.1} parent=5 // pred_region
        %s410 = ssub.s32 %s29, 1
        // Predicated region
        $region13: #{tpu_custom_call.1} parent=11 // pred_check
          %p411 = pneg %p76
        $region14: #{tpu_custom_call.1} parent=11 // pred_check_branch
          %413 = sbr.rel (%p411) target = $region16
        $region15: #{tpu_custom_call.1} parent=11 // pred_region
          _
        $region16: #{tpu_custom_call.1} parent=11 // pred_fallthru
          _
        // Predicated region
        $region17: #{tpu_custom_call.1} parent=11 // pred_check
          %p414 = pneg %p97
        $region18: #{tpu_custom_call.1} parent=11 // pred_check_branch
          %416 = sbr.rel (%p414) target = $region20
        $region19: #{tpu_custom_call.1} parent=11 // pred_region
          _
        $region20: #{tpu_custom_call.1} parent=11 // pred_fallthru
          _
        // Predicated region
        $region21: #{tpu_custom_call.1} parent=11 // pred_check
          %p417 = pneg %p118
        $region22: #{tpu_custom_call.1} parent=11 // pred_check_branch
          %419 = sbr.rel (%p417) target = $region24
        $region23: #{tpu_custom_call.1} parent=11 // pred_region
          _
        $region24: #{tpu_custom_call.1} parent=11 // pred_fallthru
          _
        // Predicated region
        $region25: #{tpu_custom_call.1} parent=11 // pred_check
          %p420 = pneg %p139
        $region26: #{tpu_custom_call.1} parent=11 // pred_check_branch
          %422 = sbr.rel (%p420) target = $region28
        $region27: #{tpu_custom_call.1} parent=11 // pred_region
          %s424 = ssub.s32 16, 16
          %425 = vsyncadd [#allocation3], %s424
          %s427 = sshll.u32 [#allocation2], 4
          %s428 = int_to_ptr.vmem [resolvable:$true] %s427
          %430 = dma.hbm_to_vmem [thread:$0]  %s4, 16, %s428, [#allocation3]
        $region28: #{tpu_custom_call.1} parent=11 // pred_fallthru
          _
        // Predicated region
        $region29: #{tpu_custom_call.1} parent=11 // pred_check
          %p431 = pneg %p160
        $region30: #{tpu_custom_call.1} parent=11 // pred_check_branch
          %433 = sbr.rel (%p431) target = $region32
        $region31: #{tpu_custom_call.1} parent=11 // pred_region
          _
        $region32: #{tpu_custom_call.1} parent=11 // pred_fallthru
          _
        // Predicated region
        $region33: #{tpu_custom_call.1} parent=11 // pred_check
          %p434 = pneg %p181
        $region34: #{tpu_custom_call.1} parent=11 // pred_check_branch
          %436 = sbr.rel (%p434) target = $region36
        $region35: #{tpu_custom_call.1} parent=11 // pred_region
          %s438 = ssub.s32 16, 16
          %439 = vsyncadd [#allocation7], %s438
          %s441 = sshll.u32 [#allocation6], 4
          %s442 = int_to_ptr.vmem [resolvable:$true] %s441
          %444 = dma.hbm_to_vmem [thread:$0]  %s6, 16, %s442, [#allocation7]
        $region36: #{tpu_custom_call.1} parent=11 // pred_fallthru
          _
        // Predicated region
        $region37: #{tpu_custom_call.1} parent=11 // pred_check
          %p445 = pneg %p202
        $region38: #{tpu_custom_call.1} parent=11 // pred_check_branch
          %447 = sbr.rel (%p445) target = $region40
        $region39: #{tpu_custom_call.1} parent=11 // pred_region
          %s449 = ssub.s32 256, 256
          %450 = vsyncadd [#allocation7], %s449
          %s451 = sshll.u32 [#allocation8], 4
          %s452 = int_to_ptr.vmem [resolvable:$true] %s451
          %457 = dma.hbm_to_vmem [thread:$0]  %s7, 256, %s452, [#allocation7], 64, 64, 4
        $region40: #{tpu_custom_call.1} parent=11 // pred_fallthru
          _
        // Predicated region
        $region41: #{tpu_custom_call.1} parent=11 // pred_check
          %p458 = pneg %p223
        $region42: #{tpu_custom_call.1} parent=11 // pred_check_branch
          %460 = sbr.rel (%p458) target = $region44
        $region43: #{tpu_custom_call.1} parent=11 // pred_region
          %s462 = ssub.s32 16, 16
          %463 = vsyncadd [#allocation10], %s462
          %s465 = sshll.u32 [#allocation9], 4
          %s466 = int_to_ptr.vmem [resolvable:$true] %s465
          %468 = dma.hbm_to_vmem [thread:$0]  %s8, 16, %s466, [#allocation10]
        $region44: #{tpu_custom_call.1} parent=11 // pred_fallthru
          _
        // Predicated region
        $region45: #{tpu_custom_call.1} parent=11 // pred_check
          %p469 = pneg %p244
        $region46: #{tpu_custom_call.1} parent=11 // pred_check_branch
          %471 = sbr.rel (%p469) target = $region48
        $region47: #{tpu_custom_call.1} parent=11 // pred_region
          %s473 = ssub.s32 16, 16
          %474 = vsyncadd [#allocation10], %s473
          %s476 = sshll.u32 [#allocation11], 4
          %s477 = int_to_ptr.vmem [resolvable:$true] %s476
          %479 = dma.hbm_to_vmem [thread:$0]  %s9, 16, %s477, [#allocation10]
        $region48: #{tpu_custom_call.1} parent=11 // pred_fallthru
          _
        // Predicated region
        $region49: #{tpu_custom_call.1} parent=11 // pred_check
          %p480 = pneg %p265
        $region50: #{tpu_custom_call.1} parent=11 // pred_check_branch
          %482 = sbr.rel (%p480) target = $region52
        $region51: #{tpu_custom_call.1} parent=11 // pred_region
          _
        $region52: #{tpu_custom_call.1} parent=11 // pred_fallthru
          _
        // Predicated region
        $region53: #{tpu_custom_call.1} parent=11 // pred_check
          %p483 = pneg %p286
        $region54: #{tpu_custom_call.1} parent=11 // pred_check_branch
          %485 = sbr.rel (%p483) target = $region56
        $region55: #{tpu_custom_call.1} parent=11 // pred_region
          _
        $region56: #{tpu_custom_call.1} parent=11 // pred_fallthru
          _
        // Predicated region
        $region57: #{tpu_custom_call.1} parent=11 // pred_check
          %p486 = pneg %p307
        $region58: #{tpu_custom_call.1} parent=11 // pred_check_branch
          %488 = sbr.rel (%p486) target = $region60
        $region59: #{tpu_custom_call.1} parent=11 // pred_region
          _
        $region60: #{tpu_custom_call.1} parent=11 // pred_fallthru
          _
        // Predicated region
        $region61: #{tpu_custom_call.1} parent=11 // pred_check
          %p489 = pneg %p328
        $region62: #{tpu_custom_call.1} parent=11 // pred_check_branch
          %491 = sbr.rel (%p489) target = $region64
        $region63: #{tpu_custom_call.1} parent=11 // pred_region
          _
        $region64: #{tpu_custom_call.1} parent=11 // pred_fallthru
          _
        // Predicated region
        $region65: #{tpu_custom_call.1} parent=11 // pred_check
          %p492 = pneg %p349
        $region66: #{tpu_custom_call.1} parent=11 // pred_check_branch
          %494 = sbr.rel (%p492) target = $region68
        $region67: #{tpu_custom_call.1} parent=11 // pred_region
          _
        $region68: #{tpu_custom_call.1} parent=11 // pred_fallthru
          _
        // Predicated region
        $region69: #{tpu_custom_call.1} parent=11 // pred_check
          %p495 = pneg %p370
        $region70: #{tpu_custom_call.1} parent=11 // pred_check_branch
          %497 = sbr.rel (%p495) target = $region72
        $region71: #{tpu_custom_call.1} parent=11 // pred_region
          %s499 = ssub.s32 16, 16
          %500 = vsyncadd [#allocation5], %s499
          %s502 = sshll.u32 %s15, 4
          %s503 = int_to_ptr.vmem [resolvable:$true] %s502
          %505 = dma.vmem_to_smem %s503, 16, [#allocation12], [#allocation5]
        $region72: #{tpu_custom_call.1} parent=11 // pred_fallthru
          _
      $region12: #{tpu_custom_call.1} parent=5 // pred_fallthru
        _
      %p506 = scmp.lt.s32.totalorder %s29, 2
      // Predicated region
      $region73: #{tpu_custom_call.1} parent=5 // pred_check
        %p507 = pneg %p506
      $region74: #{tpu_custom_call.1} parent=5 // pred_check_branch
        %509 = sbr.rel (%p507) target = $region76
      $region75: #{tpu_custom_call.1} parent=5 // pred_region
        // Predicated region
        $region77: #{tpu_custom_call.1} parent=75 // pred_check
          %p510 = pneg %p49
        $region78: #{tpu_custom_call.1} parent=75 // pred_check_branch
          %512 = sbr.rel (%p510) target = $region80
        $region79: #{tpu_custom_call.1} parent=75 // pred_region
          %p513 = scmp.lt.s32.totalorder %s29, 1
          %s514 = scalar_select %p513, %s29, 1
          %s515 = smul.addr %s514, 8
          %s516 = scalar_lea.vmem %s0, %s515
        $region80: #{tpu_custom_call.1} parent=75 // pred_fallthru
          _
      $region76: #{tpu_custom_call.1} parent=5 // pred_fallthru
        _
      %p517 = scmp.le.s32.totalorder 1, %s29
      %p518 = scmp.lt.s32.totalorder %s29, 3
      %p519 = pnand %p517, %p518
      %p520 = pneg %p519
      // Predicated region
      $region81: #{tpu_custom_call.1} parent=5 // pred_check
        _
      $region82: #{tpu_custom_call.1} parent=5 // pred_check_branch
        %522 = sbr.rel (%p519) target = $region84
      $region83: #{tpu_custom_call.1} parent=5 // pred_region
        %s523 = ssub.s32 %s29, 1
        // Predicated region
        $region85: #{tpu_custom_call.1} parent=83 // pred_check
          %p524 = pneg %p139
        $region86: #{tpu_custom_call.1} parent=83 // pred_check_branch
          %526 = sbr.rel (%p524) target = $region88
        $region87: #{tpu_custom_call.1} parent=83 // pred_region
          %527 = dma.done [#allocation3], 16
        $region88: #{tpu_custom_call.1} parent=83 // pred_fallthru
          _
        // Predicated region
        $region89: #{tpu_custom_call.1} parent=83 // pred_check
          %p528 = pneg %p181
        $region90: #{tpu_custom_call.1} parent=83 // pred_check_branch
          %530 = sbr.rel (%p528) target = $region92
        $region91: #{tpu_custom_call.1} parent=83 // pred_region
          %531 = dma.done [#allocation7], 16
        $region92: #{tpu_custom_call.1} parent=83 // pred_fallthru
          _
        // Predicated region
        $region93: #{tpu_custom_call.1} parent=83 // pred_check
          %p532 = pneg %p202
        $region94: #{tpu_custom_call.1} parent=83 // pred_check_branch
          %534 = sbr.rel (%p532) target = $region96
        $region95: #{tpu_custom_call.1} parent=83 // pred_region
          %535 = dma.done [#allocation7], 256
        $region96: #{tpu_custom_call.1} parent=83 // pred_fallthru
          _
        // Predicated region
        $region97: #{tpu_custom_call.1} parent=83 // pred_check
          %p536 = pneg %p223
        $region98: #{tpu_custom_call.1} parent=83 // pred_check_branch
          %538 = sbr.rel (%p536) target = $region100
        $region99: #{tpu_custom_call.1} parent=83 // pred_region
          %539 = dma.done [#allocation10], 16
        $region100: #{tpu_custom_call.1} parent=83 // pred_fallthru
          _
        // Predicated region
        $region101: #{tpu_custom_call.1} parent=83 // pred_check
          %p540 = pneg %p244
        $region102: #{tpu_custom_call.1} parent=83 // pred_check_branch
          %542 = sbr.rel (%p540) target = $region104
        $region103: #{tpu_custom_call.1} parent=83 // pred_region
          %543 = dma.done [#allocation10], 16
        $region104: #{tpu_custom_call.1} parent=83 // pred_fallthru
          _
        // Predicated region
        $region105: #{tpu_custom_call.1} parent=83 // pred_check
          %p544 = pneg %p370
        $region106: #{tpu_custom_call.1} parent=83 // pred_check_branch
          %546 = sbr.rel (%p544) target = $region108
        $region107: #{tpu_custom_call.1} parent=83 // pred_region
          %547 = dma.done [#allocation5], 16
        $region108: #{tpu_custom_call.1} parent=83 // pred_fallthru
          _
        %548 = sfence
        %p549 = scmp.lt.s32.totalorder %s34, 1
        %s550 = scalar_select %p549, %s34, 1
        %s551 = smul.addr %s550, 8
        %s552 = scalar_lea.vmem %s0, %s551
        %p553 = pneg %p55
        %p554 = pneg %p52
        %p555 = pneg %p76
        %p556 = pneg %p73
        %p557 = pneg %p97
        %p558 = pneg %p94
        %p559 = pneg %p118
        %p560 = pneg %p115
        %p561 = pneg %p139
        %p562 = pneg %p136
        %p563 = pneg %p160
        %p564 = pneg %p157
        %p565 = pneg %p181
        %p566 = pneg %p178
        %p567 = pneg %p202
        %p568 = pneg %p199
        %p569 = pneg %p223
        %p570 = pneg %p220
        %p571 = pneg %p244
        %p572 = pneg %p241
        %p573 = pneg %p265
        %p574 = pneg %p262
        %p575 = pneg %p286
        %p576 = pneg %p283
        %p577 = pneg %p307
        %p578 = pneg %p304
        %p579 = pneg %p328
        %p580 = pneg %p325
        %p581 = pneg %p349
        %p582 = pneg %p346
        %p583 = pneg %p370
        %p584 = pneg %p367
        %p585 = pneg %p396
        %p586 = pneg %p393
        %s587 = sand.u32 %s383, 1
        %s588 = scalar_lea.sflag [#allocation4], %s587
        %s589 = sand.u32 %s383, 1
        %s590 = smul.addr %s589, 8
        %s591 = scalar_lea.vmem [#allocation13], %s590
        %p592 = scmp.lt.s32.totalorder %s34, 1
        %s593 = scalar_select %p592, %s34, 1
        %s594 = smul.addr %s593, 8
        %s595 = scalar_lea.vmem %s0, %s594
        %v597 = vld [vmem:[%s595] sm:$0xff]
        %v598 = vld [vmem:[%s1] sm:$0x1]
        %v599 = vld [vmem:[%s2] sm:$0x1]
        %vm600 = vcmask 261120
        %v601 = vsel %vm600, %v597, 0.0
        %602 = vadd.xlane.f32.xlu0 %v601
        %v603 = vpop.xlane.xlu0 %602
        %v604 = vrcp.pop 32.0
        %v605 = vmul.f32 %v603, %v604
        %v606 = vsub.f32 %v597, %v605
        %v607 = vmul.f32 %v606, %v606
        %v608 = vsel %vm600, %v607, 0.0
        %609 = vadd.xlane.f32.xlu0 %v608
        %v610 = vpop.xlane.xlu0 %609
        %v611 = vmul.f32 %v610, %v604
        %v612 = vadd.f32 %v611, 1e-05
        %v613 = vrsqrt.pop %v612
        %v614 = vmul.f32 %v606, %v613
        %v616 = vlaneseq
        %v617 = vshrl.u32 %v616, 7
        %v618 = vsub.s32 0, %v617
        %v619 = vrot.slane %v598, %v618
        %v621 = vmul.f32 %v614, %v619
        %v623 = vlaneseq
        %v624 = vshrl.u32 %v623, 7
        %v625 = vsub.s32 0, %v624
        %v626 = vrot.slane %v599, %v625
        %v628 = vadd.f32 %v621, %v626
        %v629 = vpack.c.bf16 %v628, %v628
        %v630 = vld [vmem:[%s3] sm:$0xf]
        %v631 = vld [vmem:[%s3 + $0x4] sm:$0xf]
        %v632 = vld [vmem:[%s3 + $0x8] sm:$0xf]
        %v633 = vld [vmem:[%s3 + $0xc] sm:$0xf]
        %v634 = vld [vmem:[#allocation2] sm:$0x1]
        %v636 = vlaneseq
        %v637 = vshrl.u32 %v636, 7
        %v638 = vsub.s32 0, %v637
        %v639 = vrot.slane %v634, %v638
        %v645 = vunpack.c.l.b16 %v630
        %v646 = vunpack.c.l.b16 %v631
        %v647 = vunpack.c.l.b16 %v632
        %v648 = vunpack.c.l.b16 %v633
        %v649 = vpack.c.b16 %v646, %v645
        %v650 = vpack.c.b16 %v648, %v647
        %v654 = vsel %vm600, %v629, 0
        %656 = vmatprep.subr.bf16.mxu0 0
        %657 = vmatpush1.bf16.msra.mxu0 %v649
        %658 = vmatprep.subr.bf16.mxu0 0
        %659 = vmatpush1.bf16.msra.mxu0 %v650
        %660 = vmatprep.subr.bf16.mxu0 0
        %661 = vmatpush1.bf16.msra.mxu0 0
        %662 = vmatprep.subr.bf16.mxu0 0
        %663 = vmatpush1.bf16.msra.mxu0 0
        %664 = vmatprep.subr.bf16.mxu0 0
        %665 = vmatpush1.bf16.msra.mxu0 0
        %666 = vmatprep.subr.bf16.mxu0 0
        %667 = vmatpush1.bf16.msra.mxu0 0
        %668 = vmatprep.subr.bf16.mxu0 0
        %669 = vmatpush1.bf16.msra.mxu0 0
        %670 = vmatprep.subr.bf16.mxu0 0
        %671 = vmatpush1.bf16.msra.mxu0 0
        %672 = vmatprep.subr.bf16.mxu0 0
        %673 = vmatpush1.bf16.msra.mxu0 0
        %674 = vmatprep.subr.bf16.mxu0 0
        %675 = vmatpush1.bf16.msra.mxu0 0
        %676 = vmatprep.subr.bf16.mxu0 0
        %677 = vmatpush1.bf16.msra.mxu0 0
        %678 = vmatprep.subr.bf16.mxu0 0
        %679 = vmatpush1.bf16.msra.mxu0 0
        %680 = vmatprep.subr.bf16.mxu0 0
        %681 = vmatpush1.bf16.msra.mxu0 0
        %682 = vmatprep.subr.bf16.mxu0 0
        %683 = vmatpush1.bf16.msra.mxu0 0
        %684 = vmatprep.subr.bf16.mxu0 0
        %685 = vmatpush1.bf16.msra.mxu0 0
        %686 = vmatprep.subr.bf16.mxu0 0
        %687 = vmatpush1.bf16.msra.mxu0 0
        %688 = vmatprep.mubr.bf16.mxu0 0
        %689 = vmatmul.mubr.bf16.gmra.mrb[0].mxu0 %v654
        %v690 = vpop.f32.mrb[0].mxu0
        %v691 = vadd.f32 %v639, %v690
        %v692 = vpop.f32.mrb[0].mxu0
        %v693 = vpop.f32.mrb[0].mxu0
        %v694 = vpop.f32.mrb[0].mxu0
        %695 = vdwg.mxu0
        %v696 = vld [vmem:[%s5] sm:$0xf]
        %v697 = vld [vmem:[%s5 + $0x4] sm:$0xf]
        %v698 = vld [vmem:[%s5 + $0x8] sm:$0xf]
        %v699 = vld [vmem:[%s5 + $0xc] sm:$0xf]
        %v700 = vld [vmem:[#allocation6] sm:$0x1]
        %v702 = vlaneseq
        %v703 = vshrl.u32 %v702, 7
        %v704 = vsub.s32 0, %v703
        %v705 = vrot.slane %v700, %v704
        %v711 = vunpack.c.l.b16 %v696
        %v712 = vunpack.c.l.b16 %v697
        %v713 = vunpack.c.l.b16 %v698
        %v714 = vunpack.c.l.b16 %v699
        %v715 = vpack.c.b16 %v712, %v711
        %v716 = vpack.c.b16 %v714, %v713
        %719 = vmatprep.subr.bf16.mxu0 0
        %720 = vmatpush1.bf16.msra.mxu0 %v715
        %721 = vmatprep.subr.bf16.mxu0 0
        %722 = vmatpush1.bf16.msra.mxu0 %v716
        %723 = vmatprep.subr.bf16.mxu0 0
        %724 = vmatpush1.bf16.msra.mxu0 0
        %725 = vmatprep.subr.bf16.mxu0 0
        %726 = vmatpush1.bf16.msra.mxu0 0
        %727 = vmatprep.subr.bf16.mxu0 0
        %728 = vmatpush1.bf16.msra.mxu0 0
        %729 = vmatprep.subr.bf16.mxu0 0
        %730 = vmatpush1.bf16.msra.mxu0 0
        %731 = vmatprep.subr.bf16.mxu0 0
        %732 = vmatpush1.bf16.msra.mxu0 0
        %733 = vmatprep.subr.bf16.mxu0 0
        %734 = vmatpush1.bf16.msra.mxu0 0
        %735 = vmatprep.subr.bf16.mxu0 0
        %736 = vmatpush1.bf16.msra.mxu0 0
        %737 = vmatprep.subr.bf16.mxu0 0
        %738 = vmatpush1.bf16.msra.mxu0 0
        %739 = vmatprep.subr.bf16.mxu0 0
        %740 = vmatpush1.bf16.msra.mxu0 0
        %741 = vmatprep.subr.bf16.mxu0 0
        %742 = vmatpush1.bf16.msra.mxu0 0
        %743 = vmatprep.subr.bf16.mxu0 0
        %744 = vmatpush1.bf16.msra.mxu0 0
        %745 = vmatprep.subr.bf16.mxu0 0
        %746 = vmatpush1.bf16.msra.mxu0 0
        %747 = vmatprep.subr.bf16.mxu0 0
        %748 = vmatpush1.bf16.msra.mxu0 0
        %749 = vmatprep.subr.bf16.mxu0 0
        %750 = vmatpush1.bf16.msra.mxu0 0
        %751 = vmatprep.mubr.bf16.mxu0 0
        %752 = vmatmul.mubr.bf16.gmra.mrb[0].mxu0 %v654
        %v753 = vpop.f32.mrb[0].mxu0
        %v754 = vadd.f32 %v705, %v753
        %v755 = vpop.f32.mrb[0].mxu0
        %v756 = vpop.f32.mrb[0].mxu0
        %v757 = vpop.f32.mrb[0].mxu0
        %758 = vdwg.mxu0
        %760 = vrot.lane.b32.xlu0 %v691, 120
        %v761 = vpop.permute.xlu0 %760
        %763 = vrot.lane.b32.xlu0 %v691, 112
        %v764 = vpop.permute.xlu0 %763
        %766 = vrot.lane.b32.xlu0 %v691, 104
        %v767 = vpop.permute.xlu0 %766
        %v769 = vpack.c.bf16 %v691, %v691
        %v770 = vpack.c.bf16 %v761, %v761
        %v771 = vpack.c.bf16 %v764, %v764
        %v772 = vpack.c.bf16 %v767, %v767
        %774 = vrot.lane.b32.xlu0 %v754, 120
        %v775 = vpop.permute.xlu0 %774
        %777 = vrot.lane.b32.xlu0 %v754, 112
        %v778 = vpop.permute.xlu0 %777
        %780 = vrot.lane.b32.xlu0 %v754, 104
        %v781 = vpop.permute.xlu0 %780
        %v783 = vpack.c.bf16 %v754, %v754
        %v784 = vpack.c.bf16 %v775, %v775
        %v785 = vpack.c.bf16 %v778, %v778
        %v786 = vpack.c.bf16 %v781, %v781
        %vm787 = vcmask 64512
        %v789 = vsel %vm787, %v769, 0
        %v792 = vsel %vm787, %v783, 0
        %794 = vmatprep.subr.bf16.mxu0 0
        %795 = vmatpush1.bf16.xpose.msra.mxu0 %v792
        %796 = vmatprep.subr.bf16.mxu0 0
        %797 = vmatpush1.bf16.xpose.msra.mxu0 0
        %798 = vmatprep.subr.bf16.mxu0 0
        %799 = vmatpush1.bf16.xpose.msra.mxu0 0
        %800 = vmatprep.subr.bf16.mxu0 0
        %801 = vmatpush1.bf16.xpose.msra.mxu0 0
        %802 = vmatprep.subr.bf16.mxu0 0
        %803 = vmatpush1.bf16.xpose.msra.mxu0 0
        %804 = vmatprep.subr.bf16.mxu0 0
        %805 = vmatpush1.bf16.xpose.msra.mxu0 0
        %806 = vmatprep.subr.bf16.mxu0 0
        %807 = vmatpush1.bf16.xpose.msra.mxu0 0
        %808 = vmatprep.subr.bf16.mxu0 0
        %809 = vmatpush1.bf16.xpose.msra.mxu0 0
        %810 = vmatprep.subr.bf16.mxu0 0
        %811 = vmatpush1.bf16.xpose.msra.mxu0 0
        %812 = vmatprep.subr.bf16.mxu0 0
        %813 = vmatpush1.bf16.xpose.msra.mxu0 0
        %814 = vmatprep.subr.bf16.mxu0 0
        %815 = vmatpush1.bf16.xpose.msra.mxu0 0
        %816 = vmatprep.subr.bf16.mxu0 0
        %817 = vmatpush1.bf16.xpose.msra.mxu0 0
        %818 = vmatprep.subr.bf16.mxu0 0
        %819 = vmatpush1.bf16.xpose.msra.mxu0 0
        %820 = vmatprep.subr.bf16.mxu0 0
        %821 = vmatpush1.bf16.xpose.msra.mxu0 0
        %822 = vmatprep.subr.bf16.mxu0 0
        %823 = vmatpush1.bf16.xpose.msra.mxu0 0
        %824 = vmatprep.subr.bf16.mxu0 0
        %825 = vmatpush1.bf16.xpose.msra.mxu0 0
        %826 = vmatprep.mubr.bf16.mxu0 0
        %827 = vmatmul.mubr.bf16.gmra.mrb[0].mxu0 %v789
        %v828 = vpop.f32.mrb[0].mxu0
        %v829 = vadd.f32 0.0, %v828
        %v830 = vpop.f32.mrb[0].mxu0
        %v831 = vpop.f32.mrb[0].mxu0
        %v832 = vpop.f32.mrb[0].mxu0
        %833 = vdwg.mxu0
        %v835 = vsel %vm787, %v770, 0
        %v838 = vsel %vm787, %v784, 0
        %840 = vmatprep.subr.bf16.mxu0 0
        %841 = vmatpush1.bf16.xpose.msra.mxu0 %v838
        %842 = vmatprep.subr.bf16.mxu0 0
        %843 = vmatpush1.bf16.xpose.msra.mxu0 0
        %844 = vmatprep.subr.bf16.mxu0 0
        %845 = vmatpush1.bf16.xpose.msra.mxu0 0
        %846 = vmatprep.subr.bf16.mxu0 0
        %847 = vmatpush1.bf16.xpose.msra.mxu0 0
        %848 = vmatprep.subr.bf16.mxu0 0
        %849 = vmatpush1.bf16.xpose.msra.mxu0 0
        %850 = vmatprep.subr.bf16.mxu0 0
        %851 = vmatpush1.bf16.xpose.msra.mxu0 0
        %852 = vmatprep.subr.bf16.mxu0 0
        %853 = vmatpush1.bf16.xpose.msra.mxu0 0
        %854 = vmatprep.subr.bf16.mxu0 0
        %855 = vmatpush1.bf16.xpose.msra.mxu0 0
        %856 = vmatprep.subr.bf16.mxu0 0
        %857 = vmatpush1.bf16.xpose.msra.mxu0 0
        %858 = vmatprep.subr.bf16.mxu0 0
        %859 = vmatpush1.bf16.xpose.msra.mxu0 0
        %860 = vmatprep.subr.bf16.mxu0 0
        %861 = vmatpush1.bf16.xpose.msra.mxu0 0
        %862 = vmatprep.subr.bf16.mxu0 0
        %863 = vmatpush1.bf16.xpose.msra.mxu0 0
        %864 = vmatprep.subr.bf16.mxu0 0
        %865 = vmatpush1.bf16.xpose.msra.mxu0 0
        %866 = vmatprep.subr.bf16.mxu0 0
        %867 = vmatpush1.bf16.xpose.msra.mxu0 0
        %868 = vmatprep.subr.bf16.mxu0 0
        %869 = vmatpush1.bf16.xpose.msra.mxu0 0
        %870 = vmatprep.subr.bf16.mxu0 0
        %871 = vmatpush1.bf16.xpose.msra.mxu0 0
        %872 = vmatprep.mubr.bf16.mxu0 0
        %873 = vmatmul.mubr.bf16.gmra.mrb[0].mxu0 %v835
        %v874 = vpop.f32.mrb[0].mxu0
        %v875 = vadd.f32 0.0, %v874
        %v876 = vpop.f32.mrb[0].mxu0
        %v877 = vpop.f32.mrb[0].mxu0
        %v878 = vpop.f32.mrb[0].mxu0
        %879 = vdwg.mxu0
        %v881 = vsel %vm787, %v771, 0
        %v884 = vsel %vm787, %v785, 0
        %886 = vmatprep.subr.bf16.mxu0 0
        %887 = vmatpush1.bf16.xpose.msra.mxu0 %v884
        %888 = vmatprep.subr.bf16.mxu0 0
        %889 = vmatpush1.bf16.xpose.msra.mxu0 0
        %890 = vmatprep.subr.bf16.mxu0 0
        %891 = vmatpush1.bf16.xpose.msra.mxu0 0
        %892 = vmatprep.subr.bf16.mxu0 0
        %893 = vmatpush1.bf16.xpose.msra.mxu0 0
        %894 = vmatprep.subr.bf16.mxu0 0
        %895 = vmatpush1.bf16.xpose.msra.mxu0 0
        %896 = vmatprep.subr.bf16.mxu0 0
        %897 = vmatpush1.bf16.xpose.msra.mxu0 0
        %898 = vmatprep.subr.bf16.mxu0 0
        %899 = vmatpush1.bf16.xpose.msra.mxu0 0
        %900 = vmatprep.subr.bf16.mxu0 0
        %901 = vmatpush1.bf16.xpose.msra.mxu0 0
        %902 = vmatprep.subr.bf16.mxu0 0
        %903 = vmatpush1.bf16.xpose.msra.mxu0 0
        %904 = vmatprep.subr.bf16.mxu0 0
        %905 = vmatpush1.bf16.xpose.msra.mxu0 0
        %906 = vmatprep.subr.bf16.mxu0 0
        %907 = vmatpush1.bf16.xpose.msra.mxu0 0
        %908 = vmatprep.subr.bf16.mxu0 0
        %909 = vmatpush1.bf16.xpose.msra.mxu0 0
        %910 = vmatprep.subr.bf16.mxu0 0
        %911 = vmatpush1.bf16.xpose.msra.mxu0 0
        %912 = vmatprep.subr.bf16.mxu0 0
        %913 = vmatpush1.bf16.xpose.msra.mxu0 0
        %914 = vmatprep.subr.bf16.mxu0 0
        %915 = vmatpush1.bf16.xpose.msra.mxu0 0
        %916 = vmatprep.subr.bf16.mxu0 0
        %917 = vmatpush1.bf16.xpose.msra.mxu0 0
        %918 = vmatprep.mubr.bf16.mxu0 0
        %919 = vmatmul.mubr.bf16.gmra.mrb[0].mxu0 %v881
        %v920 = vpop.f32.mrb[0].mxu0
        %v921 = vadd.f32 0.0, %v920
        %v922 = vpop.f32.mrb[0].mxu0
        %v923 = vpop.f32.mrb[0].mxu0
        %v924 = vpop.f32.mrb[0].mxu0
        %925 = vdwg.mxu0
        %v927 = vsel %vm787, %v772, 0
        %v930 = vsel %vm787, %v786, 0
        %932 = vmatprep.subr.bf16.mxu0 0
        %933 = vmatpush1.bf16.xpose.msra.mxu0 %v930
        %934 = vmatprep.subr.bf16.mxu0 0
        %935 = vmatpush1.bf16.xpose.msra.mxu0 0
        %936 = vmatprep.subr.bf16.mxu0 0
        %937 = vmatpush1.bf16.xpose.msra.mxu0 0
        %938 = vmatprep.subr.bf16.mxu0 0
        %939 = vmatpush1.bf16.xpose.msra.mxu0 0
        %940 = vmatprep.subr.bf16.mxu0 0
        %941 = vmatpush1.bf16.xpose.msra.mxu0 0
        %942 = vmatprep.subr.bf16.mxu0 0
        %943 = vmatpush1.bf16.xpose.msra.mxu0 0
        %944 = vmatprep.subr.bf16.mxu0 0
        %945 = vmatpush1.bf16.xpose.msra.mxu0 0
        %946 = vmatprep.subr.bf16.mxu0 0
        %947 = vmatpush1.bf16.xpose.msra.mxu0 0
        %948 = vmatprep.subr.bf16.mxu0 0
        %949 = vmatpush1.bf16.xpose.msra.mxu0 0
        %950 = vmatprep.subr.bf16.mxu0 0
        %951 = vmatpush1.bf16.xpose.msra.mxu0 0
        %952 = vmatprep.subr.bf16.mxu0 0
        %953 = vmatpush1.bf16.xpose.msra.mxu0 0
        %954 = vmatprep.subr.bf16.mxu0 0
        %955 = vmatpush1.bf16.xpose.msra.mxu0 0
        %956 = vmatprep.subr.bf16.mxu0 0
        %957 = vmatpush1.bf16.xpose.msra.mxu0 0
        %958 = vmatprep.subr.bf16.mxu0 0
        %959 = vmatpush1.bf16.xpose.msra.mxu0 0
        %960 = vmatprep.subr.bf16.mxu0 0
        %961 = vmatpush1.bf16.xpose.msra.mxu0 0
        %962 = vmatprep.subr.bf16.mxu0 0
        %963 = vmatpush1.bf16.xpose.msra.mxu0 0
        %964 = vmatprep.mubr.bf16.mxu0 0
        %965 = vmatmul.mubr.bf16.gmra.mrb[0].mxu0 %v927
        %v966 = vpop.f32.mrb[0].mxu0
        %v967 = vadd.f32 0.0, %v966
        %v968 = vpop.f32.mrb[0].mxu0
        %v969 = vpop.f32.mrb[0].mxu0
        %v970 = vpop.f32.mrb[0].mxu0
        %971 = vdwg.mxu0
        %v972 = vmul.f32 %v829, 0.35355338
        %v973 = vmul.f32 %v875, 0.35355338
        %v974 = vmul.f32 %v921, 0.35355338
        %v975 = vmul.f32 %v967, 0.35355338
        %v976 = vsel %vm787, %v972, -inf
        %977 = vmax.xlane.f32.xlu0 %v976
        %v978 = vpop.xlane.xlu0 %977
        %v979 = vsel %vm787, %v973, -inf
        %980 = vmax.xlane.f32.xlu0 %v979
        %v981 = vpop.xlane.xlu0 %980
        %v982 = vsel %vm787, %v974, -inf
        %983 = vmax.xlane.f32.xlu0 %v982
        %v984 = vpop.xlane.xlu0 %983
        %v985 = vsel %vm787, %v975, -inf
        %986 = vmax.xlane.f32.xlu0 %v985
        %v987 = vpop.xlane.xlu0 %986
        %v988 = vsub.f32 %v972, %v978
        %v989 = vsub.f32 %v973, %v981
        %v990 = vsub.f32 %v974, %v984
        %v991 = vsub.f32 %v975, %v987
        %v992 = vmul.f32 %v988, 1.442695
        %v993 = vpow.pop %v992
        %v994 = vmul.f32 %v989, 1.442695
        %v995 = vpow.pop %v994
        %v996 = vmul.f32 %v990, 1.442695
        %v997 = vpow.pop %v996
        %v998 = vmul.f32 %v991, 1.442695
        %v999 = vpow.pop %v998
        %v1000 = vsel %vm787, %v993, 0.0
        %1001 = vadd.xlane.f32.xlu0 %v1000
        %v1002 = vpop.xlane.xlu0 %1001
        %v1003 = vsel %vm787, %v995, 0.0
        %1004 = vadd.xlane.f32.xlu0 %v1003
        %v1005 = vpop.xlane.xlu0 %1004
        %v1006 = vsel %vm787, %v997, 0.0
        %1007 = vadd.xlane.f32.xlu0 %v1006
        %v1008 = vpop.xlane.xlu0 %1007
        %v1009 = vsel %vm787, %v999, 0.0
        %1010 = vadd.xlane.f32.xlu0 %v1009
        %v1011 = vpop.xlane.xlu0 %1010
        %v1012 = vrcp.pop %v1002
        %v1013 = vrcp.pop %v1005
        %v1014 = vrcp.pop %v1008
        %v1015 = vrcp.pop %v1011
        %v1016 = vmul.f32 %v993, %v1012
        %v1017 = vmul.f32 %v995, %v1013
        %v1018 = vmul.f32 %v997, %v1014
        %v1019 = vmul.f32 %v999, %v1015
        %v1020 = vpack.c.bf16 %v1016, %v1016
        %v1021 = vpack.c.bf16 %v1017, %v1017
        %v1022 = vpack.c.bf16 %v1018, %v1018
        %v1023 = vpack.c.bf16 %v1019, %v1019
        %1025 = vrot.lane.b32.xlu0 %v783, 96
        %v1026 = vpop.permute.xlu0 %1025
        %v1028 = vsel %vm787, %v1020, 0
        %vm1030 = vcmask 1043456
        %v1032 = vsel %vm1030, %v1026, 0
        %1034 = vmatprep.subr.bf16.mxu0 0
        %1035 = vmatpush1.bf16.msra.mxu0 %v1032
        %1036 = vmatprep.subr.bf16.mxu0 0
        %1037 = vmatpush1.bf16.msra.mxu0 0
        %1038 = vmatprep.subr.bf16.mxu0 0
        %1039 = vmatpush1.bf16.msra.mxu0 0
        %1040 = vmatprep.subr.bf16.mxu0 0
        %1041 = vmatpush1.bf16.msra.mxu0 0
        %1042 = vmatprep.subr.bf16.mxu0 0
        %1043 = vmatpush1.bf16.msra.mxu0 0
        %1044 = vmatprep.subr.bf16.mxu0 0
        %1045 = vmatpush1.bf16.msra.mxu0 0
        %1046 = vmatprep.subr.bf16.mxu0 0
        %1047 = vmatpush1.bf16.msra.mxu0 0
        %1048 = vmatprep.subr.bf16.mxu0 0
        %1049 = vmatpush1.bf16.msra.mxu0 0
        %1050 = vmatprep.subr.bf16.mxu0 0
        %1051 = vmatpush1.bf16.msra.mxu0 0
        %1052 = vmatprep.subr.bf16.mxu0 0
        %1053 = vmatpush1.bf16.msra.mxu0 0
        %1054 = vmatprep.subr.bf16.mxu0 0
        %1055 = vmatpush1.bf16.msra.mxu0 0
        %1056 = vmatprep.subr.bf16.mxu0 0
        %1057 = vmatpush1.bf16.msra.mxu0 0
        %1058 = vmatprep.subr.bf16.mxu0 0
        %1059 = vmatpush1.bf16.msra.mxu0 0
        %1060 = vmatprep.subr.bf16.mxu0 0
        %1061 = vmatpush1.bf16.msra.mxu0 0
        %1062 = vmatprep.subr.bf16.mxu0 0
        %1063 = vmatpush1.bf16.msra.mxu0 0
        %1064 = vmatprep.subr.bf16.mxu0 0
        %1065 = vmatpush1.bf16.msra.mxu0 0
        %1066 = vmatprep.mubr.bf16.mxu0 0
        %1067 = vmatmul.mubr.bf16.gmra.mrb[0].mxu0 %v1028
        %v1068 = vpop.f32.mrb[0].mxu0
        %v1069 = vadd.f32 0.0, %v1068
        %v1070 = vpop.f32.mrb[0].mxu0
        %v1071 = vpop.f32.mrb[0].mxu0
        %v1072 = vpop.f32.mrb[0].mxu0
        %1073 = vdwg.mxu0
        %1075 = vrot.lane.b32.xlu0 %v784, 96
        %v1076 = vpop.permute.xlu0 %1075
        %v1078 = vsel %vm787, %v1021, 0
        %v1081 = vsel %vm1030, %v1076, 0
        %1083 = vmatprep.subr.bf16.mxu0 0
        %1084 = vmatpush1.bf16.msra.mxu0 %v1081
        %1085 = vmatprep.subr.bf16.mxu0 0
        %1086 = vmatpush1.bf16.msra.mxu0 0
        %1087 = vmatprep.subr.bf16.mxu0 0
        %1088 = vmatpush1.bf16.msra.mxu0 0
        %1089 = vmatprep.subr.bf16.mxu0 0
        %1090 = vmatpush1.bf16.msra.mxu0 0
        %1091 = vmatprep.subr.bf16.mxu0 0
        %1092 = vmatpush1.bf16.msra.mxu0 0
        %1093 = vmatprep.subr.bf16.mxu0 0
        %1094 = vmatpush1.bf16.msra.mxu0 0
        %1095 = vmatprep.subr.bf16.mxu0 0
        %1096 = vmatpush1.bf16.msra.mxu0 0
        %1097 = vmatprep.subr.bf16.mxu0 0
        %1098 = vmatpush1.bf16.msra.mxu0 0
        %1099 = vmatprep.subr.bf16.mxu0 0
        %1100 = vmatpush1.bf16.msra.mxu0 0
        %1101 = vmatprep.subr.bf16.mxu0 0
        %1102 = vmatpush1.bf16.msra.mxu0 0
        %1103 = vmatprep.subr.bf16.mxu0 0
        %1104 = vmatpush1.bf16.msra.mxu0 0
        %1105 = vmatprep.subr.bf16.mxu0 0
        %1106 = vmatpush1.bf16.msra.mxu0 0
        %1107 = vmatprep.subr.bf16.mxu0 0
        %1108 = vmatpush1.bf16.msra.mxu0 0
        %1109 = vmatprep.subr.bf16.mxu0 0
        %1110 = vmatpush1.bf16.msra.mxu0 0
        %1111 = vmatprep.subr.bf16.mxu0 0
        %1112 = vmatpush1.bf16.msra.mxu0 0
        %1113 = vmatprep.subr.bf16.mxu0 0
        %1114 = vmatpush1.bf16.msra.mxu0 0
        %1115 = vmatprep.mubr.bf16.mxu0 0
        %1116 = vmatmul.mubr.bf16.gmra.mrb[0].mxu0 %v1078
        %v1117 = vpop.f32.mrb[0].mxu0
        %v1118 = vadd.f32 0.0, %v1117
        %v1119 = vpop.f32.mrb[0].mxu0
        %v1120 = vpop.f32.mrb[0].mxu0
        %v1121 = vpop.f32.mrb[0].mxu0
        %1122 = vdwg.mxu0
        %1124 = vrot.lane.b32.xlu0 %v785, 96
        %v1125 = vpop.permute.xlu0 %1124
        %v1127 = vsel %vm787, %v1022, 0
        %v1130 = vsel %vm1030, %v1125, 0
        %1132 = vmatprep.subr.bf16.mxu0 0
        %1133 = vmatpush1.bf16.msra.mxu0 %v1130
        %1134 = vmatprep.subr.bf16.mxu0 0
        %1135 = vmatpush1.bf16.msra.mxu0 0
        %1136 = vmatprep.subr.bf16.mxu0 0
        %1137 = vmatpush1.bf16.msra.mxu0 0
        %1138 = vmatprep.subr.bf16.mxu0 0
        %1139 = vmatpush1.bf16.msra.mxu0 0
        %1140 = vmatprep.subr.bf16.mxu0 0
        %1141 = vmatpush1.bf16.msra.mxu0 0
        %1142 = vmatprep.subr.bf16.mxu0 0
        %1143 = vmatpush1.bf16.msra.mxu0 0
        %1144 = vmatprep.subr.bf16.mxu0 0
        %1145 = vmatpush1.bf16.msra.mxu0 0
        %1146 = vmatprep.subr.bf16.mxu0 0
        %1147 = vmatpush1.bf16.msra.mxu0 0
        %1148 = vmatprep.subr.bf16.mxu0 0
        %1149 = vmatpush1.bf16.msra.mxu0 0
        %1150 = vmatprep.subr.bf16.mxu0 0
        %1151 = vmatpush1.bf16.msra.mxu0 0
        %1152 = vmatprep.subr.bf16.mxu0 0
        %1153 = vmatpush1.bf16.msra.mxu0 0
        %1154 = vmatprep.subr.bf16.mxu0 0
        %1155 = vmatpush1.bf16.msra.mxu0 0
        %1156 = vmatprep.subr.bf16.mxu0 0
        %1157 = vmatpush1.bf16.msra.mxu0 0
        %1158 = vmatprep.subr.bf16.mxu0 0
        %1159 = vmatpush1.bf16.msra.mxu0 0
        %1160 = vmatprep.subr.bf16.mxu0 0
        %1161 = vmatpush1.bf16.msra.mxu0 0
        %1162 = vmatprep.subr.bf16.mxu0 0
        %1163 = vmatpush1.bf16.msra.mxu0 0
        %1164 = vmatprep.mubr.bf16.mxu0 0
        %1165 = vmatmul.mubr.bf16.gmra.mrb[0].mxu0 %v1127
        %v1166 = vpop.f32.mrb[0].mxu0
        %v1167 = vadd.f32 0.0, %v1166
        %v1168 = vpop.f32.mrb[0].mxu0
        %v1169 = vpop.f32.mrb[0].mxu0
        %v1170 = vpop.f32.mrb[0].mxu0
        %1171 = vdwg.mxu0
        %1173 = vrot.lane.b32.xlu0 %v786, 96
        %v1174 = vpop.permute.xlu0 %1173
        %v1176 = vsel %vm787, %v1023, 0
        %v1179 = vsel %vm1030, %v1174, 0
        %1181 = vmatprep.subr.bf16.mxu0 0
        %1182 = vmatpush1.bf16.msra.mxu0 %v1179
        %1183 = vmatprep.subr.bf16.mxu0 0
        %1184 = vmatpush1.bf16.msra.mxu0 0
        %1185 = vmatprep.subr.bf16.mxu0 0
        %1186 = vmatpush1.bf16.msra.mxu0 0
        %1187 = vmatprep.subr.bf16.mxu0 0
        %1188 = vmatpush1.bf16.msra.mxu0 0
        %1189 = vmatprep.subr.bf16.mxu0 0
        %1190 = vmatpush1.bf16.msra.mxu0 0
        %1191 = vmatprep.subr.bf16.mxu0 0
        %1192 = vmatpush1.bf16.msra.mxu0 0
        %1193 = vmatprep.subr.bf16.mxu0 0
        %1194 = vmatpush1.bf16.msra.mxu0 0
        %1195 = vmatprep.subr.bf16.mxu0 0
        %1196 = vmatpush1.bf16.msra.mxu0 0
        %1197 = vmatprep.subr.bf16.mxu0 0
        %1198 = vmatpush1.bf16.msra.mxu0 0
        %1199 = vmatprep.subr.bf16.mxu0 0
        %1200 = vmatpush1.bf16.msra.mxu0 0
        %1201 = vmatprep.subr.bf16.mxu0 0
        %1202 = vmatpush1.bf16.msra.mxu0 0
        %1203 = vmatprep.subr.bf16.mxu0 0
        %1204 = vmatpush1.bf16.msra.mxu0 0
        %1205 = vmatprep.subr.bf16.mxu0 0
        %1206 = vmatpush1.bf16.msra.mxu0 0
        %1207 = vmatprep.subr.bf16.mxu0 0
        %1208 = vmatpush1.bf16.msra.mxu0 0
        %1209 = vmatprep.subr.bf16.mxu0 0
        %1210 = vmatpush1.bf16.msra.mxu0 0
        %1211 = vmatprep.subr.bf16.mxu0 0
        %1212 = vmatpush1.bf16.msra.mxu0 0
        %1213 = vmatprep.mubr.bf16.mxu0 0
        %1214 = vmatmul.mubr.bf16.gmra.mrb[0].mxu0 %v1176
        %v1215 = vpop.f32.mrb[0].mxu0
        %v1216 = vadd.f32 0.0, %v1215
        %v1217 = vpop.f32.mrb[0].mxu0
        %v1218 = vpop.f32.mrb[0].mxu0
        %v1219 = vpop.f32.mrb[0].mxu0
        %1220 = vdwg.mxu0
        %1222 = vrot.lane.b32.xlu0 %v1118, 8
        %v1223 = vpop.permute.xlu0 %1222
        %1226 = vrot.lane.b32.xlu0 %v1167, 16
        %v1227 = vpop.permute.xlu0 %1226
        %1230 = vrot.lane.b32.xlu0 %v1216, 24
        %v1231 = vpop.permute.xlu0 %1230
        %v1233 = vsel %vm787, %v1069, %v1223
        %vm1234 = vcmask 130048
        %v1235 = vsel %vm1234, %v1233, %v1227
        %vm1236 = vcmask 195584
        %v1237 = vsel %vm1236, %v1235, %v1231
        %v1238 = vpack.c.bf16 %v1237, %v1237
        %v1239 = vld [vmem:[#allocation8] sm:$0xf]
        %v1240 = vld [vmem:[#allocation8 + $0x4] sm:$0xf]
        %v1241 = vld [vmem:[#allocation8 + $0x8] sm:$0xf]
        %v1242 = vld [vmem:[#allocation8 + $0xc] sm:$0xf]
        %v1243 = vld [vmem:[#allocation9] sm:$0x1]
        %v1245 = vlaneseq
        %v1246 = vshrl.u32 %v1245, 7
        %v1247 = vsub.s32 0, %v1246
        %v1248 = vrot.slane %v1243, %v1247
        %v1254 = vunpack.c.l.b16 %v1239
        %v1255 = vunpack.c.l.b16 %v1240
        %v1256 = vunpack.c.l.b16 %v1241
        %v1257 = vunpack.c.l.b16 %v1242
        %v1258 = vpack.c.b16 %v1255, %v1254
        %v1259 = vpack.c.b16 %v1257, %v1256
        %v1263 = vsel %vm600, %v1238, 0
        %1265 = vmatprep.subr.bf16.mxu0 0
        %1266 = vmatpush1.bf16.msra.mxu0 %v1258
        %1267 = vmatprep.subr.bf16.mxu0 0
        %1268 = vmatpush1.bf16.msra.mxu0 %v1259
        %1269 = vmatprep.subr.bf16.mxu0 0
        %1270 = vmatpush1.bf16.msra.mxu0 0
        %1271 = vmatprep.subr.bf16.mxu0 0
        %1272 = vmatpush1.bf16.msra.mxu0 0
        %1273 = vmatprep.subr.bf16.mxu0 0
        %1274 = vmatpush1.bf16.msra.mxu0 0
        %1275 = vmatprep.subr.bf16.mxu0 0
        %1276 = vmatpush1.bf16.msra.mxu0 0
        %1277 = vmatprep.subr.bf16.mxu0 0
        %1278 = vmatpush1.bf16.msra.mxu0 0
        %1279 = vmatprep.subr.bf16.mxu0 0
        %1280 = vmatpush1.bf16.msra.mxu0 0
        %1281 = vmatprep.subr.bf16.mxu0 0
        %1282 = vmatpush1.bf16.msra.mxu0 0
        %1283 = vmatprep.subr.bf16.mxu0 0
        %1284 = vmatpush1.bf16.msra.mxu0 0
        %1285 = vmatprep.subr.bf16.mxu0 0
        %1286 = vmatpush1.bf16.msra.mxu0 0
        %1287 = vmatprep.subr.bf16.mxu0 0
        %1288 = vmatpush1.bf16.msra.mxu0 0
        %1289 = vmatprep.subr.bf16.mxu0 0
        %1290 = vmatpush1.bf16.msra.mxu0 0
        %1291 = vmatprep.subr.bf16.mxu0 0
        %1292 = vmatpush1.bf16.msra.mxu0 0
        %1293 = vmatprep.subr.bf16.mxu0 0
        %1294 = vmatpush1.bf16.msra.mxu0 0
        %1295 = vmatprep.subr.bf16.mxu0 0
        %1296 = vmatpush1.bf16.msra.mxu0 0
        %1297 = vmatprep.mubr.bf16.mxu0 0
        %1298 = vmatmul.mubr.bf16.gmra.mrb[0].mxu0 %v1263
        %v1299 = vpop.f32.mrb[0].mxu0
        %v1300 = vadd.f32 %v1248, %v1299
        %v1301 = vpop.f32.mrb[0].mxu0
        %v1302 = vpop.f32.mrb[0].mxu0
        %v1303 = vpop.f32.mrb[0].mxu0
        %1304 = vdwg.mxu0
        %s1305 = sld [smem:[#allocation12]]
        %v1306 = vstv %s1305
        %v1307 = vmul.f32 %v1306, %v1300
        %v1308 = vadd.f32 %v597, %v1307
        %v1309 = vld [vmem:[#allocation11] sm:$0x1]
        %v1310 = vld [vmem:[%s10] sm:$0x1]
        %v1311 = vsel %vm600, %v1308, 0.0
        %1312 = vadd.xlane.f32.xlu0 %v1311
        %v1313 = vpop.xlane.xlu0 %1312
        %v1314 = vmul.f32 %v1313, %v604
        %v1315 = vsub.f32 %v1308, %v1314
        %v1316 = vmul.f32 %v1315, %v1315
        %v1317 = vsel %vm600, %v1316, 0.0
        %1318 = vadd.xlane.f32.xlu0 %v1317
        %v1319 = vpop.xlane.xlu0 %1318
        %v1320 = vmul.f32 %v1319, %v604
        %v1321 = vadd.f32 %v1320, 1e-05
        %v1322 = vrsqrt.pop %v1321
        %v1323 = vmul.f32 %v1315, %v1322
        %v1325 = vlaneseq
        %v1326 = vshrl.u32 %v1325, 7
        %v1327 = vsub.s32 0, %v1326
        %v1328 = vrot.slane %v1309, %v1327
        %v1330 = vmul.f32 %v1323, %v1328
        %v1332 = vlaneseq
        %v1333 = vshrl.u32 %v1332, 7
        %v1334 = vsub.s32 0, %v1333
        %v1335 = vrot.slane %v1310, %v1334
        %v1337 = vadd.f32 %v1330, %v1335
        %v1338 = vpack.c.bf16 %v1337, %v1337
        %v1339 = vld [vmem:[%s11] sm:$0xf]
        %v1340 = vld [vmem:[%s11 + $0x4] sm:$0xf]
        %v1341 = vld [vmem:[%s11 + $0x8] sm:$0xf]
        %v1342 = vld [vmem:[%s11 + $0xc] sm:$0xf]
        %v1343 = vld [vmem:[%s12] sm:$0x1]
        %v1345 = vlaneseq
        %v1346 = vshrl.u32 %v1345, 7
        %v1347 = vsub.s32 0, %v1346
        %v1348 = vrot.slane %v1343, %v1347
        %v1354 = vunpack.c.l.b16 %v1339
        %v1355 = vunpack.c.l.b16 %v1340
        %v1356 = vunpack.c.l.b16 %v1341
        %v1357 = vunpack.c.l.b16 %v1342
        %v1358 = vpack.c.b16 %v1355, %v1354
        %v1359 = vpack.c.b16 %v1357, %v1356
        %v1363 = vsel %vm600, %v1338, 0
        %1365 = vmatprep.subr.bf16.mxu0 0
        %1366 = vmatpush1.bf16.msra.mxu0 %v1358
        %1367 = vmatprep.subr.bf16.mxu0 0
        %1368 = vmatpush1.bf16.msra.mxu0 %v1359
        %1369 = vmatprep.subr.bf16.mxu0 0
        %1370 = vmatpush1.bf16.msra.mxu0 0
        %1371 = vmatprep.subr.bf16.mxu0 0
        %1372 = vmatpush1.bf16.msra.mxu0 0
        %1373 = vmatprep.subr.bf16.mxu0 0
        %1374 = vmatpush1.bf16.msra.mxu0 0
        %1375 = vmatprep.subr.bf16.mxu0 0
        %1376 = vmatpush1.bf16.msra.mxu0 0
        %1377 = vmatprep.subr.bf16.mxu0 0
        %1378 = vmatpush1.bf16.msra.mxu0 0
        %1379 = vmatprep.subr.bf16.mxu0 0
        %1380 = vmatpush1.bf16.msra.mxu0 0
        %1381 = vmatprep.subr.bf16.mxu0 0
        %1382 = vmatpush1.bf16.msra.mxu0 0
        %1383 = vmatprep.subr.bf16.mxu0 0
        %1384 = vmatpush1.bf16.msra.mxu0 0
        %1385 = vmatprep.subr.bf16.mxu0 0
        %1386 = vmatpush1.bf16.msra.mxu0 0
        %1387 = vmatprep.subr.bf16.mxu0 0
        %1388 = vmatpush1.bf16.msra.mxu0 0
        %1389 = vmatprep.subr.bf16.mxu0 0
        %1390 = vmatpush1.bf16.msra.mxu0 0
        %1391 = vmatprep.subr.bf16.mxu0 0
        %1392 = vmatpush1.bf16.msra.mxu0 0
        %1393 = vmatprep.subr.bf16.mxu0 0
        %1394 = vmatpush1.bf16.msra.mxu0 0
        %1395 = vmatprep.subr.bf16.mxu0 0
        %1396 = vmatpush1.bf16.msra.mxu0 0
        %1397 = vmatprep.mubr.bf16.mxu0 0
        %1398 = vmatmul.mubr.bf16.gmra.mrb[0].mxu0 %v1363
        %v1399 = vpop.f32.mrb[0].mxu0
        %v1400 = vadd.f32 %v1348, %v1399
        %v1401 = vpop.f32.mrb[0].mxu0
        %v1402 = vpop.f32.mrb[0].mxu0
        %v1403 = vpop.f32.mrb[0].mxu0
        %1404 = vdwg.mxu0
        %v1405 = vmax.f32 %v1400, 0.0
        %v1406 = vpack.c.bf16 %v1405, %v1405
        %v1407 = vld [vmem:[%s13] sm:$0xf]
        %v1408 = vld [vmem:[%s13 + $0x4] sm:$0xf]
        %v1409 = vld [vmem:[%s13 + $0x8] sm:$0xf]
        %v1410 = vld [vmem:[%s13 + $0xc] sm:$0xf]
        %v1411 = vld [vmem:[%s13 + $0x10] sm:$0xf]
        %v1412 = vld [vmem:[%s13 + $0x14] sm:$0xf]
        %v1413 = vld [vmem:[%s13 + $0x18] sm:$0xf]
        %v1414 = vld [vmem:[%s13 + $0x1c] sm:$0xf]
        %v1415 = vld [vmem:[%s14] sm:$0x1]
        %v1417 = vlaneseq
        %v1418 = vshrl.u32 %v1417, 7
        %v1419 = vsub.s32 0, %v1418
        %v1420 = vrot.slane %v1415, %v1419
        %v1430 = vunpack.c.l.b16 %v1407
        %v1431 = vunpack.c.l.b16 %v1408
        %v1432 = vunpack.c.l.b16 %v1409
        %v1433 = vunpack.c.l.b16 %v1410
        %v1434 = vunpack.c.l.b16 %v1411
        %v1435 = vunpack.c.l.b16 %v1412
        %v1436 = vunpack.c.l.b16 %v1413
        %v1437 = vunpack.c.l.b16 %v1414
        %v1438 = vpack.c.b16 %v1431, %v1430
        %v1439 = vpack.c.b16 %v1433, %v1432
        %v1440 = vpack.c.b16 %v1435, %v1434
        %v1441 = vpack.c.b16 %v1437, %v1436
        %vm1446 = vcmask 523264
        %v1448 = vsel %vm1446, %v1406, 0
        %1450 = vmatprep.subr.bf16.mxu0 0
        %1451 = vmatpush1.bf16.msra.mxu0 %v1438
        %1452 = vmatprep.subr.bf16.mxu0 0
        %1453 = vmatpush1.bf16.msra.mxu0 %v1439
        %1454 = vmatprep.subr.bf16.mxu0 0
        %1455 = vmatpush1.bf16.msra.mxu0 %v1440
        %1456 = vmatprep.subr.bf16.mxu0 0
        %1457 = vmatpush1.bf16.msra.mxu0 %v1441
        %1458 = vmatprep.subr.bf16.mxu0 0
        %1459 = vmatpush1.bf16.msra.mxu0 0
        %1460 = vmatprep.subr.bf16.mxu0 0
        %1461 = vmatpush1.bf16.msra.mxu0 0
        %1462 = vmatprep.subr.bf16.mxu0 0
        %1463 = vmatpush1.bf16.msra.mxu0 0
        %1464 = vmatprep.subr.bf16.mxu0 0
        %1465 = vmatpush1.bf16.msra.mxu0 0
        %1466 = vmatprep.subr.bf16.mxu0 0
        %1467 = vmatpush1.bf16.msra.mxu0 0
        %1468 = vmatprep.subr.bf16.mxu0 0
        %1469 = vmatpush1.bf16.msra.mxu0 0
        %1470 = vmatprep.subr.bf16.mxu0 0
        %1471 = vmatpush1.bf16.msra.mxu0 0
        %1472 = vmatprep.subr.bf16.mxu0 0
        %1473 = vmatpush1.bf16.msra.mxu0 0
        %1474 = vmatprep.subr.bf16.mxu0 0
        %1475 = vmatpush1.bf16.msra.mxu0 0
        %1476 = vmatprep.subr.bf16.mxu0 0
        %1477 = vmatpush1.bf16.msra.mxu0 0
        %1478 = vmatprep.subr.bf16.mxu0 0
        %1479 = vmatpush1.bf16.msra.mxu0 0
        %1480 = vmatprep.subr.bf16.mxu0 0
        %1481 = vmatpush1.bf16.msra.mxu0 0
        %1482 = vmatprep.mubr.bf16.mxu0 0
        %1483 = vmatmul.mubr.bf16.gmra.mrb[0].mxu0 %v1448
        %v1484 = vpop.f32.mrb[0].mxu0
        %v1485 = vadd.f32 %v1420, %v1484
        %v1486 = vpop.f32.mrb[0].mxu0
        %v1487 = vpop.f32.mrb[0].mxu0
        %v1488 = vpop.f32.mrb[0].mxu0
        %1489 = vdwg.mxu0
        %s1490 = sld [smem:[#allocation12 + $0x1]]
        %v1491 = vstv %s1490
        %v1492 = vmul.f32 %v1491, %v1485
        %v1493 = vadd.f32 %v1308, %v1492
        %1494 = vst.msk [vmem:[%s591] sm:$0xff] %vm600, %v1493
        %s1495 = sand.u32 %s383, 1
        %s1496 = scalar_lea.sflag [#allocation4], %s1495
        %s1497 = sand.u32 %s383, 1
        %s1498 = smul.addr %s1497, 8
        %s1499 = scalar_lea.vmem [#allocation13], %s1498
        // Predicated region
        $region109: #{tpu_custom_call.1} parent=83 // pred_check
          %p1500 = pneg %p393
        $region110: #{tpu_custom_call.1} parent=83 // pred_check_branch
          %1502 = sbr.rel (%p1500) target = $region112
        $region111: #{tpu_custom_call.1} parent=83 // pred_region
          %s1504 = ssub.s32 128, 128
          %1505 = vsyncadd %s1496, %s1504
          %s1506 = smul.addr %s34, 128
          %s1507 = scalar_lea.hbm %s16, %s1506
          %s1509 = sshll.u32 %s1499, 4
          %s1510 = int_to_ptr.vmem [resolvable:$true] %s1509
          %1512 = dma.vmem_to_hbm [thread:$0]  %s1510, 128, %s1507, %s1496
        $region112: #{tpu_custom_call.1} parent=83 // pred_fallthru
          _
      $region84: #{tpu_custom_call.1} parent=5 // pred_fallthru
        _
      %p1513 = scmp.le.s32.totalorder 2, %s29
      // Predicated region
      $region113: #{tpu_custom_call.1} parent=5 // pred_check
        %p1514 = pneg %p1513
      $region114: #{tpu_custom_call.1} parent=5 // pred_check_branch
        %1516 = sbr.rel (%p1514) target = $region116
      $region115: #{tpu_custom_call.1} parent=5 // pred_region
        %s1517 = ssub.s32 %s29, 2
        // Predicated region
        $region117: #{tpu_custom_call.1} parent=115 // pred_check
          %p1518 = pneg %p399
        $region118: #{tpu_custom_call.1} parent=115 // pred_check_branch
          %1520 = sbr.rel (%p1518) target = $region120
        $region119: #{tpu_custom_call.1} parent=115 // pred_region
          %s1521 = sand.u32 %s384, 1
          %s1522 = scalar_lea.sflag [#allocation4], %s1521
          %s1523 = sand.u32 %s384, 1
          %s1524 = smul.addr %s1523, 8
          %s1525 = scalar_lea.vmem [#allocation13], %s1524
          %1526 = dma.done %s1522, 128
        $region120: #{tpu_custom_call.1} parent=115 // pred_fallthru
          _
      $region116: #{tpu_custom_call.1} parent=5 // pred_fallthru
        _
    $region6: #{tpu_custom_call.1} parent=1 // loop_footer
      %s33 = sadd.s32 1, %s29
    $region7: #{tpu_custom_call.1} parent=1 // loop_footer_branch
      %28 = sbr.rel target = $region3
    $region8: #{tpu_custom_call.1} parent=1 // loop_exit
      _
    %1527 = vsyncpa [#allocation3], 1
    %s1528 = scalar_lea.sflag [#allocation3], 1
    %1529 = vsyncpa %s1528, 1
    %1530 = vsyncpa [#allocation7], 1
    %1531 = vsyncpa [#allocation10], 1
    %1532 = vsyncpa [#allocation4], 1
    %s1533 = scalar_lea.sflag [#allocation4], 1
    %1534 = vsyncpa %s1533, 1
    %1535 = vsyncpa [#allocation5], 1
    %s1536 = scalar_lea.sflag [#allocation5], 1
    %1537 = vsyncpa %s1536, 1

</llo_original>
